<compile_context>
chip_gen: v7x
topology: tpu7x:2x2x1
jax: 0.10.0
libtpu: 0.0.40
codegen_flags: <defaults>
</compile_context>

<pallas_src>
import functools

import jax
import jax.numpy as jnp
from jax import lax
from jax.experimental import pallas as pl
from jax.experimental.pallas import tpu as pltpu


BN_EPS = 1e-3


def _make_conv_bn_relu_kernel(N, H, W, Cin, Cout, KH, KW, stride):
    Hh, Wh = H // stride, W // stride
    OH = (H - KH) // stride + 1
    OW = (W - KW) // stride + 1
    RW = OH * Wh          # rows per image in the padded [OH, Wh] row layout
    PB = Hh * Wh          # rows per parity block
    count = N * OH * OW   # BN sample count (valid rows only)

    def kernel(x_ref, w_ref, gamma_ref, beta_ref, mask_ref, o_ref):
        # x_ref:     [N*4*Hh*Wh, Cin]   parity-split, channel-last input rows
        #            row r = (((n*2 + h%2)*2 + w%2)*Hh + h//2)*Wh + w//2
        # w_ref:     [KH*KW, Cin, Cout] per-tap weight slabs (pre-packed)
        # gamma_ref: [1, Cout] f32      beta_ref: [1, Cout] f32
        # mask_ref:  [RW, 1]   f32      1.0 where row % Wh < OW else 0.0
        # o_ref:     [N*RW, Cout] f32   row i of image n -> (oh=i//Wh, ow=i%Wh)

        # ---- Convolution: 9 dots per image (one per tap) into a single
        # register accumulator.  Each dot is [RW, Cin] @ [Cin, Cout] with f32
        # accumulation; the RW-row window is one contiguous static slice of
        # x_ref (window row i = q*Wh + r maps to output (oh=q, ow=r), rows
        # with r >= OW are padding and never contribute to the final result).
        accs = []
        for n in range(N):
            acc = jnp.zeros((RW, Cout), jnp.float32)
            for kh in range(KH):
                for kw in range(KW):
                    wt = w_ref[kh * KW + kw]                        # [Cin, Cout]
                    base = (((n * 2 + kh % 2) * 2 + kw % 2) * PB
                            + (kh // 2) * Wh + (kw // 2))
                    xs = x_ref[base:base + RW, :]                   # [RW, Cin]
                    acc = acc + jnp.dot(
                        xs, wt, preferred_element_type=jnp.float32)
            accs.append(acc)

        # ---- BatchNorm (training-mode stats over the N*OH*OW valid rows) +
        # ReLU, computed entirely from the in-register accumulators.  Correct
        # only because the whole batch axis lives in this single invocation.
        msk = mask_ref[...]                                         # [RW, 1]
        inv_cnt = jnp.float32(1.0 / count)
        total = jnp.zeros((1, Cout), jnp.float32)
        for acc in accs:
            total = total + jnp.sum(acc * msk, axis=0, keepdims=True)
        mean = total * inv_cnt                                      # [1, Cout]
        sq = jnp.zeros((1, Cout), jnp.float32)
        for acc in accs:
            c = (acc - mean) * msk
            sq = sq + jnp.sum(c * c, axis=0, keepdims=True)
        var = sq * inv_cnt
        scale = lax.rsqrt(var + BN_EPS) * gamma_ref[...]            # [1, Cout]
        beta = beta_ref[...]

        # Single lane-dense-ish store of the whole output block per image.
        for n, acc in enumerate(accs):
            o_ref[n * RW:(n + 1) * RW, :] = jnp.maximum(
                (acc - mean) * scale + beta, 0.0)

    return kernel


def pack_weights(weight_oihw, compute_dtype=jnp.bfloat16):
    """OIHW [Cout, Cin, KH, KW] -> per-tap slabs [KH*KW, Cin, Cout].

    Call ONCE at init (outside the per-step jitted forward) so the transpose
    and dtype cast are not re-executed / re-DMAed on every call.
    """
    Cout, Cin, KH, KW = weight_oihw.shape
    return jnp.transpose(weight_oihw, (2, 3, 1, 0)).reshape(
        KH * KW, Cin, Cout).astype(compute_dtype)


def conv_bn_relu(x_nchw, w_taps, gamma, beta, *, stride=2):
    """x_nchw: [N, Cin, H, W]; w_taps: pack_weights(weight) [KH*KW, Cin, Cout]."""
    N, Cin, H, W = x_nchw.shape
    KHKW, Cin_w, Cout = w_taps.shape
    assert Cin_w == Cin
    KH = KW = int(round(KHKW ** 0.5))
    assert KH * KW == KHKW
    assert stride == 2 and H % 2 == 0 and W % 2 == 0, (
        "kernel specialized for the module's stride-2 conv on even H/W")
    OH = (H - KH) // stride + 1
    OW = (W - KW) // stride + 1
    Hh, Wh = H // stride, W // stride
    RW = OH * Wh
    compute_dtype = w_taps.dtype

    # Input: NCHW -> parity-split channel-last rows, one fused XLA
    # reshape+transpose (+ optional downcast).  Row r = (((n*2+h%2)*2+w%2)*Hh
    # + h//2)*Wh + w//2 holds x[n, :, h, w].
    x_par = jnp.transpose(
        x_nchw.reshape(N, Cin, Hh, stride, Wh, stride), (0, 3, 5, 2, 4, 1))
    x_rows = x_par.reshape(
        N * stride * stride * Hh * Wh, Cin).astype(compute_dtype)

    gamma2 = gamma.astype(jnp.float32).reshape(1, Cout)
    beta2 = beta.astype(jnp.float32).reshape(1, Cout)
    # Valid-row mask: row i of an image's [OH, Wh] layout is a real output
    # column iff i % Wh < OW.
    mask = (jnp.arange(RW, dtype=jnp.int32) % Wh < OW).astype(
        jnp.float32).reshape(RW, 1)

    kernel = _make_conv_bn_relu_kernel(N, H, W, Cin, Cout, KH, KW, stride)

    itemsize = jnp.dtype(compute_dtype).itemsize
    cost = pl.CostEstimate(
        flops=int(2 * N * RW * KH * KW * Cin * Cout + 10 * N * RW * Cout),
        transcendentals=int(Cout),
        bytes_accessed=int((x_rows.size + w_taps.size) * itemsize
                           + (gamma2.size + beta2.size + mask.size
                              + N * RW * Cout) * 4),
    )

    vmem = pl.BlockSpec(memory_space=pltpu.MemorySpace.VMEM)
    out_flat = pl.pallas_call(
        kernel,
        out_shape=jax.ShapeDtypeStruct((N * RW, Cout), jnp.float32),
        in_specs=[vmem] * 5,
        out_specs=vmem,
        cost_estimate=cost,
    )(x_rows, w_taps, gamma2, beta2, mask)

    # [N*RW, Cout] -> NCHW [N, Cout, OH, OW]: drop the padded columns (ow>=OW)
    # and transpose; fuses into one small XLA op.
    out_nhwc = out_flat.reshape(N, OH, Wh, Cout)[:, :, :OW, :]
    return jnp.transpose(out_nhwc, (0, 3, 1, 2))


def _reference(x_nchw, weight_oihw, gamma, beta, *, stride=2):
    """Pure-JAX f32 reference mirroring the PyTorch (train-mode BN) forward."""
    y = lax.conv_general_dilated(
        x_nchw.astype(jnp.float32),
        weight_oihw.astype(jnp.float32),
        window_strides=(stride, stride),
        padding="VALID",
        dimension_numbers=("NCHW", "OIHW", "NCHW"),
    )
    mean = jnp.mean(y, axis=(0, 2, 3), keepdims=True)
    var = jnp.mean((y - mean) ** 2, axis=(0, 2, 3), keepdims=True)
    g = gamma.reshape(1, -1, 1, 1)
    b = beta.reshape(1, -1, 1, 1)
    y = (y - mean) * lax.rsqrt(var + BN_EPS) * g + b
    return jnp.maximum(y, 0.0)


if __name__ == "__main__":
    key = jax.random.PRNGKey(0)
    k_x, k_w, k_g, k_b = jax.random.split(key, 4)

    # Shapes implied by the module: x [1, 192, 12, 12], Conv2d(192,192,3,stride=2).
    N, Cin, H, W = 1, 192, 12, 12
    Cout, KH, KW = 192, 3, 3

    x = jax.random.normal(k_x, (N, Cin, H, W), dtype=jnp.float32)
    weight = jax.random.normal(k_w, (Cout, Cin, KH, KW), dtype=jnp.float32) * 0.05
    gamma = 1.0 + 0.1 * jax.random.normal(k_g, (Cout,), dtype=jnp.float32)
    beta = 0.1 * jax.random.normal(k_b, (Cout,), dtype=jnp.float32)

    ref = jax.block_until_ready(_reference(x, weight, gamma, beta, stride=2))

    fused = jax.jit(functools.partial(conv_bn_relu, stride=2))

    # f32-operand MXU path: strict check against the f32 reference.
    w_f32 = jax.block_until_ready(pack_weights(weight, jnp.float32))
    out = jax.block_until_ready(fused(x, w_f32, gamma, beta))
    assert out.shape == (N, Cout, 5, 5), out.shape
    assert jnp.allclose(out, ref, atol=1e-3, rtol=1e-3), \
        float(jnp.max(jnp.abs(out - ref)))

    # bf16-operand default fast path (f32 accumulation + f32 epilogue): bf16
    # inputs cost ~2 decimal digits over the K=9*192 contraction, so check with
    # a correspondingly looser tolerance.
    w_bf16 = jax.block_until_ready(pack_weights(weight, jnp.bfloat16))
    out_bf16 = jax.block_until_ready(fused(x, w_bf16, gamma, beta))
    assert out_bf16.shape == (N, Cout, 5, 5), out_bf16.shape
    assert jnp.allclose(out_bf16, ref, atol=5e-2, rtol=5e-2), \
        float(jnp.max(jnp.abs(out_bf16 - ref)))

    print("KERNEL_OK")
</pallas_src>

<mosaic_0001>
module attributes {stable_mosaic.version = 11 : i64} {
  func.func @kernel(%arg0: memref<144x192xf32, #tpu.memory_space<vmem>>, %arg1: memref<9x192x192xf32, #tpu.memory_space<vmem>>, %arg2: memref<1x192xf32, #tpu.memory_space<vmem>>, %arg3: memref<1x192xf32, #tpu.memory_space<vmem>>, %arg4: memref<30x1xf32, #tpu.memory_space<vmem>>, %arg5: memref<30x192xf32, #tpu.memory_space<vmem>>) attributes {dimension_semantics = [], scalar_prefetch = 0 : i64, scratch_operands = 0 : i64, tpu.core_type = #tpu.core_type<tc>} {
    %cst = arith.constant 0.000000e+00 : f32
    %0 = vector.broadcast %cst : f32 to vector<30x192xf32>
    %c0 = arith.constant 0 : index
    %c0_0 = arith.constant 0 : index
    %c0_1 = arith.constant 0 : index
    %1 = vector.load %arg1[%c0, %c0_0, %c0_1] : memref<9x192x192xf32, #tpu.memory_space<vmem>>, vector<1x192x192xf32>
    %2 = vector.shape_cast %1 : vector<1x192x192xf32> to vector<192x192xf32>
    %c0_2 = arith.constant 0 : index
    %c0_3 = arith.constant 0 : index
    %3 = vector.load %arg0[%c0_2, %c0_3] : memref<144x192xf32, #tpu.memory_space<vmem>>, vector<30x192xf32>
    %cst_4 = arith.constant dense<0.000000e+00> : vector<30x192xf32>
    %4 = tpu.matmul %3, %2, %cst_4 {dimension_numbers = #tpu.dot_dimension_numbers<[1], [0], [0], [1], [0, 0, 1, 1], [], []>} : vector<30x192xf32>, vector<192x192xf32>, vector<30x192xf32> -> vector<30x192xf32>
    %5 = arith.addf %0, %4 : vector<30x192xf32>
    %c1 = arith.constant 1 : index
    %c0_5 = arith.constant 0 : index
    %c0_6 = arith.constant 0 : index
    %6 = vector.load %arg1[%c1, %c0_5, %c0_6] : memref<9x192x192xf32, #tpu.memory_space<vmem>>, vector<1x192x192xf32>
    %7 = vector.shape_cast %6 : vector<1x192x192xf32> to vector<192x192xf32>
    %c36 = arith.constant 36 : index
    %c0_7 = arith.constant 0 : index
    %8 = vector.load %arg0[%c36, %c0_7] : memref<144x192xf32, #tpu.memory_space<vmem>>, vector<30x192xf32>
    %cst_8 = arith.constant dense<0.000000e+00> : vector<30x192xf32>
    %9 = tpu.matmul %8, %7, %cst_8 {dimension_numbers = #tpu.dot_dimension_numbers<[1], [0], [0], [1], [0, 0, 1, 1], [], []>} : vector<30x192xf32>, vector<192x192xf32>, vector<30x192xf32> -> vector<30x192xf32>
    %10 = arith.addf %5, %9 : vector<30x192xf32>
    %c2 = arith.constant 2 : index
    %c0_9 = arith.constant 0 : index
    %c0_10 = arith.constant 0 : index
    %11 = vector.load %arg1[%c2, %c0_9, %c0_10] : memref<9x192x192xf32, #tpu.memory_space<vmem>>, vector<1x192x192xf32>
    %12 = vector.shape_cast %11 : vector<1x192x192xf32> to vector<192x192xf32>
    %c1_11 = arith.constant 1 : index
    %c0_12 = arith.constant 0 : index
    %13 = vector.load %arg0[%c1_11, %c0_12] : memref<144x192xf32, #tpu.memory_space<vmem>>, vector<30x192xf32>
    %cst_13 = arith.constant dense<0.000000e+00> : vector<30x192xf32>
    %14 = tpu.matmul %13, %12, %cst_13 {dimension_numbers = #tpu.dot_dimension_numbers<[1], [0], [0], [1], [0, 0, 1, 1], [], []>} : vector<30x192xf32>, vector<192x192xf32>, vector<30x192xf32> -> vector<30x192xf32>
    %15 = arith.addf %10, %14 : vector<30x192xf32>
    %c3 = arith.constant 3 : index
    %c0_14 = arith.constant 0 : index
    %c0_15 = arith.constant 0 : index
    %16 = vector.load %arg1[%c3, %c0_14, %c0_15] : memref<9x192x192xf32, #tpu.memory_space<vmem>>, vector<1x192x192xf32>
    %17 = vector.shape_cast %16 : vector<1x192x192xf32> to vector<192x192xf32>
    %c72 = arith.constant 72 : index
    %c0_16 = arith.constant 0 : index
    %18 = vector.load %arg0[%c72, %c0_16] : memref<144x192xf32, #tpu.memory_space<vmem>>, vector<30x192xf32>
    %cst_17 = arith.constant dense<0.000000e+00> : vector<30x192xf32>
    %19 = tpu.matmul %18, %17, %cst_17 {dimension_numbers = #tpu.dot_dimension_numbers<[1], [0], [0], [1], [0, 0, 1, 1], [], []>} : vector<30x192xf32>, vector<192x192xf32>, vector<30x192xf32> -> vector<30x192xf32>
    %20 = arith.addf %15, %19 : vector<30x192xf32>
    %c4 = arith.constant 4 : index
    %c0_18 = arith.constant 0 : index
    %c0_19 = arith.constant 0 : index
    %21 = vector.load %arg1[%c4, %c0_18, %c0_19] : memref<9x192x192xf32, #tpu.memory_space<vmem>>, vector<1x192x192xf32>
    %22 = vector.shape_cast %21 : vector<1x192x192xf32> to vector<192x192xf32>
    %c108 = arith.constant 108 : index
    %c0_20 = arith.constant 0 : index
    %23 = vector.load %arg0[%c108, %c0_20] : memref<144x192xf32, #tpu.memory_space<vmem>>, vector<30x192xf32>
    %cst_21 = arith.constant dense<0.000000e+00> : vector<30x192xf32>
    %24 = tpu.matmul %23, %22, %cst_21 {dimension_numbers = #tpu.dot_dimension_numbers<[1], [0], [0], [1], [0, 0, 1, 1], [], []>} : vector<30x192xf32>, vector<192x192xf32>, vector<30x192xf32> -> vector<30x192xf32>
    %25 = arith.addf %20, %24 : vector<30x192xf32>
    %c5 = arith.constant 5 : index
    %c0_22 = arith.constant 0 : index
    %c0_23 = arith.constant 0 : index
    %26 = vector.load %arg1[%c5, %c0_22, %c0_23] : memref<9x192x192xf32, #tpu.memory_space<vmem>>, vector<1x192x192xf32>
    %27 = vector.shape_cast %26 : vector<1x192x192xf32> to vector<192x192xf32>
    %c73 = arith.constant 73 : index
    %c0_24 = arith.constant 0 : index
    %28 = vector.load %arg0[%c73, %c0_24] : memref<144x192xf32, #tpu.memory_space<vmem>>, vector<30x192xf32>
    %cst_25 = arith.constant dense<0.000000e+00> : vector<30x192xf32>
    %29 = tpu.matmul %28, %27, %cst_25 {dimension_numbers = #tpu.dot_dimension_numbers<[1], [0], [0], [1], [0, 0, 1, 1], [], []>} : vector<30x192xf32>, vector<192x192xf32>, vector<30x192xf32> -> vector<30x192xf32>
    %30 = arith.addf %25, %29 : vector<30x192xf32>
    %c6 = arith.constant 6 : index
    %c0_26 = arith.constant 0 : index
    %c0_27 = arith.constant 0 : index
    %31 = vector.load %arg1[%c6, %c0_26, %c0_27] : memref<9x192x192xf32, #tpu.memory_space<vmem>>, vector<1x192x192xf32>
    %32 = vector.shape_cast %31 : vector<1x192x192xf32> to vector<192x192xf32>
    %c6_28 = arith.constant 6 : index
    %c0_29 = arith.constant 0 : index
    %33 = vector.load %arg0[%c6_28, %c0_29] : memref<144x192xf32, #tpu.memory_space<vmem>>, vector<30x192xf32>
    %cst_30 = arith.constant dense<0.000000e+00> : vector<30x192xf32>
    %34 = tpu.matmul %33, %32, %cst_30 {dimension_numbers = #tpu.dot_dimension_numbers<[1], [0], [0], [1], [0, 0, 1, 1], [], []>} : vector<30x192xf32>, vector<192x192xf32>, vector<30x192xf32> -> vector<30x192xf32>
    %35 = arith.addf %30, %34 : vector<30x192xf32>
    %c7 = arith.constant 7 : index
    %c0_31 = arith.constant 0 : index
    %c0_32 = arith.constant 0 : index
    %36 = vector.load %arg1[%c7, %c0_31, %c0_32] : memref<9x192x192xf32, #tpu.memory_space<vmem>>, vector<1x192x192xf32>
    %37 = vector.shape_cast %36 : vector<1x192x192xf32> to vector<192x192xf32>
    %c42 = arith.constant 42 : index
    %c0_33 = arith.constant 0 : index
    %38 = vector.load %arg0[%c42, %c0_33] : memref<144x192xf32, #tpu.memory_space<vmem>>, vector<30x192xf32>
    %cst_34 = arith.constant dense<0.000000e+00> : vector<30x192xf32>
    %39 = tpu.matmul %38, %37, %cst_34 {dimension_numbers = #tpu.dot_dimension_numbers<[1], [0], [0], [1], [0, 0, 1, 1], [], []>} : vector<30x192xf32>, vector<192x192xf32>, vector<30x192xf32> -> vector<30x192xf32>
    %40 = arith.addf %35, %39 : vector<30x192xf32>
    %c8 = arith.constant 8 : index
    %c0_35 = arith.constant 0 : index
    %c0_36 = arith.constant 0 : index
    %41 = vector.load %arg1[%c8, %c0_35, %c0_36] : memref<9x192x192xf32, #tpu.memory_space<vmem>>, vector<1x192x192xf32>
    %42 = vector.shape_cast %41 : vector<1x192x192xf32> to vector<192x192xf32>
    %c7_37 = arith.constant 7 : index
    %c0_38 = arith.constant 0 : index
    %43 = vector.load %arg0[%c7_37, %c0_38] : memref<144x192xf32, #tpu.memory_space<vmem>>, vector<30x192xf32>
    %cst_39 = arith.constant dense<0.000000e+00> : vector<30x192xf32>
    %44 = tpu.matmul %43, %42, %cst_39 {dimension_numbers = #tpu.dot_dimension_numbers<[1], [0], [0], [1], [0, 0, 1, 1], [], []>} : vector<30x192xf32>, vector<192x192xf32>, vector<30x192xf32> -> vector<30x192xf32>
    %45 = arith.addf %40, %44 : vector<30x192xf32>
    %c0_40 = arith.constant 0 : index
    %c0_41 = arith.constant 0 : index
    %46 = vector.load %arg4[%c0_40, %c0_41] : memref<30x1xf32, #tpu.memory_space<vmem>>, vector<30x1xf32>
    %cst_42 = arith.constant 0.000000e+00 : f32
    %47 = vector.broadcast %cst_42 : f32 to vector<1x192xf32>
    %48 = vector.broadcast %46 : vector<30x1xf32> to vector<30x192xf32>
    %49 = arith.mulf %45, %48 : vector<30x192xf32>
    %cst_43 = arith.constant dense<0.000000e+00> : vector<192xf32>
    %50 = vector.multi_reduction <add>, %49, %cst_43 [0] : vector<30x192xf32> to vector<192xf32>
    %51 = vector.shape_cast %50 : vector<192xf32> to vector<1x192xf32>
    %52 = arith.addf %47, %51 : vector<1x192xf32>
    %cst_44 = arith.constant 4.000000e-02 : f32
    %53 = vector.broadcast %cst_44 : f32 to vector<1x192xf32>
    %54 = arith.mulf %52, %53 : vector<1x192xf32>
    %cst_45 = arith.constant 0.000000e+00 : f32
    %55 = vector.broadcast %cst_45 : f32 to vector<1x192xf32>
    %56 = vector.broadcast %54 : vector<1x192xf32> to vector<30x192xf32>
    %57 = arith.subf %45, %56 : vector<30x192xf32>
    %58 = vector.broadcast %46 : vector<30x1xf32> to vector<30x192xf32>
    %59 = arith.mulf %57, %58 : vector<30x192xf32>
    %60 = arith.mulf %59, %59 : vector<30x192xf32>
    %cst_46 = arith.constant dense<0.000000e+00> : vector<192xf32>
    %61 = vector.multi_reduction <add>, %60, %cst_46 [0] : vector<30x192xf32> to vector<192xf32>
    %62 = vector.shape_cast %61 : vector<192xf32> to vector<1x192xf32>
    %63 = arith.addf %55, %62 : vector<1x192xf32>
    %cst_47 = arith.constant 4.000000e-02 : f32
    %64 = vector.broadcast %cst_47 : f32 to vector<1x192xf32>
    %65 = arith.mulf %63, %64 : vector<1x192xf32>
    %cst_48 = arith.constant 1.000000e-03 : f32
    %66 = vector.broadcast %cst_48 : f32 to vector<1x192xf32>
    %67 = arith.addf %65, %66 : vector<1x192xf32>
    %68 = math.rsqrt %67 : vector<1x192xf32>
    %c0_49 = arith.constant 0 : index
    %c0_50 = arith.constant 0 : index
    %69 = vector.load %arg2[%c0_49, %c0_50] : memref<1x192xf32, #tpu.memory_space<vmem>>, vector<1x192xf32>
    %70 = arith.mulf %68, %69 : vector<1x192xf32>
    %c0_51 = arith.constant 0 : index
    %c0_52 = arith.constant 0 : index
    %71 = vector.load %arg3[%c0_51, %c0_52] : memref<1x192xf32, #tpu.memory_space<vmem>>, vector<1x192xf32>
    %72 = vector.broadcast %54 : vector<1x192xf32> to vector<30x192xf32>
    %73 = arith.subf %45, %72 : vector<30x192xf32>
    %74 = vector.broadcast %70 : vector<1x192xf32> to vector<30x192xf32>
    %75 = arith.mulf %73, %74 : vector<30x192xf32>
    %76 = vector.broadcast %71 : vector<1x192xf32> to vector<30x192xf32>
    %77 = arith.addf %75, %76 : vector<30x192xf32>
    %cst_53 = arith.constant 0.000000e+00 : f32
    %78 = vector.broadcast %cst_53 : f32 to vector<30x192xf32>
    %79 = arith.maximumf %77, %78 : vector<30x192xf32>
    %c0_54 = arith.constant 0 : index
    %c0_55 = arith.constant 0 : index
    %80 = vector.load %arg5[%c0_54, %c0_55] : memref<30x192xf32, #tpu.memory_space<vmem>>, vector<30x192xf32>
    tpu.vector_store %arg5[%c0_54, %c0_55], %79 {strides = array<i32>} : memref<30x192xf32, #tpu.memory_space<vmem>>, vector<30x192xf32>,
    return
  }
}

</mosaic_0001>

<llo_original>
// kernel: conv_bn_relu.1
$region0: #{conv_bn_relu.1}
  #allocation0 [shape = 'u32[]', space=smem, size = 0x4, offset = 0x4, fixed_abs, tag = 'smem constant byte address 0x4 - core index']
  #allocation1 [shape = 'u32[144,128]{1,0:T(1,128)}', space=vmem, size = 0x12000, scoped, tag = 'internal scratch']
  %s0 = inlined_call_operand.vmem [shape: f32[144,192], index: 0, kind: input, shape index: {}]
  %s1 = inlined_call_operand.hbm [shape: f32[9,192,192], index: 1, kind: input, shape index: {}]
  %s2 = inlined_call_operand.hbm [shape: f32[1,192], index: 2, kind: input, shape index: {}]
  %s3 = inlined_call_operand.hbm [shape: f32[1,192], index: 3, kind: input, shape index: {}]
  %s4 = inlined_call_operand.vmem [shape: f32[30,1], index: 4, kind: input, shape index: {}]
  %s5 = inlined_call_operand.vmem [shape: f32[30,192], index: 5, kind: output, shape index: {}]
  %s6 = sld [smem:[#allocation0]]
  $region42: #{conv_bn_relu.1} parent=0
    _
  %s8 = ssub.s32 1, %s6
  %s9 = scalar_select 0, %s8, %s6
  $region1: #{conv_bn_relu.1} parent=0
    #allocation2 [shape = 'u8[1769472]{0}', space=vmem, size = 0x1b0000, scoped, tag = 'input window, operand 1, single buffered']
    #allocation3 [shape = 's32[1]{0}', space=sflag, size = 0x4, scoped, tag = 'scoped memory for conv_bn_relu.1']
    #allocation4 [shape = 'u8[1024]{0}', space=vmem, size = 0x400, scoped, tag = 'input window, operand 2, single buffered']
    #allocation5 [shape = 's32[1]{0}', space=sflag, size = 0x4, scoped, tag = 'scoped memory for conv_bn_relu.1']
    #allocation6 [shape = 'u8[1024]{0}', space=vmem, size = 0x400, scoped, tag = 'input window, operand 3, single buffered']
    %10 = vsyncpa [#allocation3], 0
    %11 = vsyncpa [#allocation5], 0
    // Predicated region
    $region2: #{conv_bn_relu.1} parent=1 // pred_check
      _
    $region3: #{conv_bn_relu.1} parent=1 // pred_check_branch
      %13 = sbr.rel (0) target = $region5
    $region4: #{conv_bn_relu.1} parent=1 // pred_region
      _
    $region5: #{conv_bn_relu.1} parent=1 // pred_fallthru
      _
    // Predicated region
    $region6: #{conv_bn_relu.1} parent=1 // pred_check
      _
    $region7: #{conv_bn_relu.1} parent=1 // pred_check_branch
      %15 = sbr.rel (0) target = $region9
    $region8: #{conv_bn_relu.1} parent=1 // pred_region
      %s17 = ssub.s32 55296, 55296
      %18 = vsyncadd [#allocation3], %s17
      %s19 = sshll.u32 [#allocation2], 4
      %s20 = int_to_ptr.vmem [resolvable:$true] %s19
      %25 = dma.hbm_to_vmem [thread:$0]  %s1, 55296, %s20, [#allocation3], 256, 256, 16
    $region9: #{conv_bn_relu.1} parent=1 // pred_fallthru
      _
    // Predicated region
    $region10: #{conv_bn_relu.1} parent=1 // pred_check
      _
    $region11: #{conv_bn_relu.1} parent=1 // pred_check_branch
      %27 = sbr.rel (0) target = $region13
    $region12: #{conv_bn_relu.1} parent=1 // pred_region
      %s29 = ssub.s32 32, 32
      %30 = vsyncadd [#allocation5], %s29
      %s32 = sshll.u32 [#allocation4], 4
      %s33 = int_to_ptr.vmem [resolvable:$true] %s32
      %35 = dma.hbm_to_vmem [thread:$0]  %s2, 32, %s33, [#allocation5]
    $region13: #{conv_bn_relu.1} parent=1 // pred_fallthru
      _
    // Predicated region
    $region14: #{conv_bn_relu.1} parent=1 // pred_check
      _
    $region15: #{conv_bn_relu.1} parent=1 // pred_check_branch
      %37 = sbr.rel (0) target = $region17
    $region16: #{conv_bn_relu.1} parent=1 // pred_region
      %s39 = ssub.s32 32, 32
      %40 = vsyncadd [#allocation5], %s39
      %s42 = sshll.u32 [#allocation6], 4
      %s43 = int_to_ptr.vmem [resolvable:$true] %s42
      %45 = dma.hbm_to_vmem [thread:$0]  %s3, 32, %s43, [#allocation5]
    $region17: #{conv_bn_relu.1} parent=1 // pred_fallthru
      _
    // Predicated region
    $region18: #{conv_bn_relu.1} parent=1 // pred_check
      _
    $region19: #{conv_bn_relu.1} parent=1 // pred_check_branch
      %47 = sbr.rel (0) target = $region21
    $region20: #{conv_bn_relu.1} parent=1 // pred_region
      _
    $region21: #{conv_bn_relu.1} parent=1 // pred_fallthru
      _
    // Predicated region
    $region22: #{conv_bn_relu.1} parent=1 // pred_check
      _
    $region23: #{conv_bn_relu.1} parent=1 // pred_check_branch
      %49 = sbr.rel (0) target = $region25
    $region24: #{conv_bn_relu.1} parent=1 // pred_region
      %50 = dma.done [#allocation3], 55296
    $region25: #{conv_bn_relu.1} parent=1 // pred_fallthru
      _
    // Predicated region
    $region26: #{conv_bn_relu.1} parent=1 // pred_check
      _
    $region27: #{conv_bn_relu.1} parent=1 // pred_check_branch
      %52 = sbr.rel (0) target = $region29
    $region28: #{conv_bn_relu.1} parent=1 // pred_region
      %53 = dma.done [#allocation5], 32
    $region29: #{conv_bn_relu.1} parent=1 // pred_fallthru
      _
    // Predicated region
    $region30: #{conv_bn_relu.1} parent=1 // pred_check
      _
    $region31: #{conv_bn_relu.1} parent=1 // pred_check_branch
      %55 = sbr.rel (0) target = $region33
    $region32: #{conv_bn_relu.1} parent=1 // pred_region
      %56 = dma.done [#allocation5], 32
    $region33: #{conv_bn_relu.1} parent=1 // pred_fallthru
      _
    %v57 = vld [vmem:[#allocation2] sm:$0xff]
    %v58 = vld [vmem:[#allocation2 + $0x8] sm:$0xff]
    %v59 = vld [vmem:[#allocation2 + $0x10] sm:$0xff]
    %v60 = vld [vmem:[#allocation2 + $0x18] sm:$0xff]
    %v61 = vld [vmem:[#allocation2 + $0x20] sm:$0xff]
    %v62 = vld [vmem:[#allocation2 + $0x28] sm:$0xff]
    %v63 = vld [vmem:[#allocation2 + $0x30] sm:$0xff]
    %v64 = vld [vmem:[#allocation2 + $0x38] sm:$0xff]
    %v65 = vld [vmem:[#allocation2 + $0x40] sm:$0xff]
    %v66 = vld [vmem:[#allocation2 + $0x48] sm:$0xff]
    %v67 = vld [vmem:[#allocation2 + $0x50] sm:$0xff]
    %v68 = vld [vmem:[#allocation2 + $0x58] sm:$0xff]
    %v69 = vld [vmem:[#allocation2 + $0x60] sm:$0xff]
    %v70 = vld [vmem:[#allocation2 + $0x68] sm:$0xff]
    %v71 = vld [vmem:[#allocation2 + $0x70] sm:$0xff]
    %v72 = vld [vmem:[#allocation2 + $0x78] sm:$0xff]
    %v73 = vld [vmem:[#allocation2 + $0x80] sm:$0xff]
    %v74 = vld [vmem:[#allocation2 + $0x88] sm:$0xff]
    %v75 = vld [vmem:[#allocation2 + $0x90] sm:$0xff]
    %v76 = vld [vmem:[#allocation2 + $0x98] sm:$0xff]
    %v77 = vld [vmem:[#allocation2 + $0xa0] sm:$0xff]
    %v78 = vld [vmem:[#allocation2 + $0xa8] sm:$0xff]
    %v79 = vld [vmem:[#allocation2 + $0xb0] sm:$0xff]
    %v80 = vld [vmem:[#allocation2 + $0xb8] sm:$0xff]
    %v81 = vld [vmem:[#allocation2 + $0xc0] sm:$0xff]
    %v82 = vld [vmem:[#allocation2 + $0xc8] sm:$0xff]
    %v83 = vld [vmem:[#allocation2 + $0xd0] sm:$0xff]
    %v84 = vld [vmem:[#allocation2 + $0xd8] sm:$0xff]
    %v85 = vld [vmem:[#allocation2 + $0xe0] sm:$0xff]
    %v86 = vld [vmem:[#allocation2 + $0xe8] sm:$0xff]
    %v87 = vld [vmem:[#allocation2 + $0xf0] sm:$0xff]
    %v88 = vld [vmem:[#allocation2 + $0xf8] sm:$0xff]
    %v89 = vld [vmem:[#allocation2 + $0x100] sm:$0xff]
    %v90 = vld [vmem:[#allocation2 + $0x108] sm:$0xff]
    %v91 = vld [vmem:[#allocation2 + $0x110] sm:$0xff]
    %v92 = vld [vmem:[#allocation2 + $0x118] sm:$0xff]
    %v93 = vld [vmem:[#allocation2 + $0x120] sm:$0xff]
    %v94 = vld [vmem:[#allocation2 + $0x128] sm:$0xff]
    %v95 = vld [vmem:[#allocation2 + $0x130] sm:$0xff]
    %v96 = vld [vmem:[#allocation2 + $0x138] sm:$0xff]
    %v97 = vld [vmem:[#allocation2 + $0x140] sm:$0xff]
    %v98 = vld [vmem:[#allocation2 + $0x148] sm:$0xff]
    %v99 = vld [vmem:[#allocation2 + $0x150] sm:$0xff]
    %v100 = vld [vmem:[#allocation2 + $0x158] sm:$0xff]
    %v101 = vld [vmem:[#allocation2 + $0x160] sm:$0xff]
    %v102 = vld [vmem:[#allocation2 + $0x168] sm:$0xff]
    %v103 = vld [vmem:[#allocation2 + $0x170] sm:$0xff]
    %v104 = vld [vmem:[#allocation2 + $0x178] sm:$0xff]
    %v105 = vld [vmem:[%s0] sm:$0xff]
    %v106 = vld [vmem:[%s0 + $0x8] sm:$0xff]
    %v107 = vld [vmem:[%s0 + $0x10] sm:$0xff]
    %v108 = vld [vmem:[%s0 + $0x18] sm:$0xff]
    %v109 = vld [vmem:[%s0 + $0x20] sm:$0xff]
    %v110 = vld [vmem:[%s0 + $0x28] sm:$0xff]
    %v111 = vld [vmem:[%s0 + $0x30] sm:$0x3f]
    %v112 = vld [vmem:[%s0 + $0x38] sm:$0x3f]
    %s113 = scalar_lea.vmem [#allocation2], 384
    %v114 = vld [vmem:[%s113] sm:$0xff]
    %v115 = vld [vmem:[%s113 + $0x8] sm:$0xff]
    %v116 = vld [vmem:[%s113 + $0x10] sm:$0xff]
    %v117 = vld [vmem:[%s113 + $0x18] sm:$0xff]
    %v118 = vld [vmem:[%s113 + $0x20] sm:$0xff]
    %v119 = vld [vmem:[%s113 + $0x28] sm:$0xff]
    %v120 = vld [vmem:[%s113 + $0x30] sm:$0xff]
    %v121 = vld [vmem:[%s113 + $0x38] sm:$0xff]
    %v122 = vld [vmem:[%s113 + $0x40] sm:$0xff]
    %v123 = vld [vmem:[%s113 + $0x48] sm:$0xff]
    %v124 = vld [vmem:[%s113 + $0x50] sm:$0xff]
    %v125 = vld [vmem:[%s113 + $0x58] sm:$0xff]
    %v126 = vld [vmem:[%s113 + $0x60] sm:$0xff]
    %v127 = vld [vmem:[%s113 + $0x68] sm:$0xff]
    %v128 = vld [vmem:[%s113 + $0x70] sm:$0xff]
    %v129 = vld [vmem:[%s113 + $0x78] sm:$0xff]
    %v130 = vld [vmem:[%s113 + $0x80] sm:$0xff]
    %v131 = vld [vmem:[%s113 + $0x88] sm:$0xff]
    %v132 = vld [vmem:[%s113 + $0x90] sm:$0xff]
    %v133 = vld [vmem:[%s113 + $0x98] sm:$0xff]
    %v134 = vld [vmem:[%s113 + $0xa0] sm:$0xff]
    %v135 = vld [vmem:[%s113 + $0xa8] sm:$0xff]
    %v136 = vld [vmem:[%s113 + $0xb0] sm:$0xff]
    %v137 = vld [vmem:[%s113 + $0xb8] sm:$0xff]
    %v138 = vld [vmem:[%s113 + $0xc0] sm:$0xff]
    %v139 = vld [vmem:[%s113 + $0xc8] sm:$0xff]
    %v140 = vld [vmem:[%s113 + $0xd0] sm:$0xff]
    %v141 = vld [vmem:[%s113 + $0xd8] sm:$0xff]
    %v142 = vld [vmem:[%s113 + $0xe0] sm:$0xff]
    %v143 = vld [vmem:[%s113 + $0xe8] sm:$0xff]
    %v144 = vld [vmem:[%s113 + $0xf0] sm:$0xff]
    %v145 = vld [vmem:[%s113 + $0xf8] sm:$0xff]
    %v146 = vld [vmem:[%s113 + $0x100] sm:$0xff]
    %v147 = vld [vmem:[%s113 + $0x108] sm:$0xff]
    %v148 = vld [vmem:[%s113 + $0x110] sm:$0xff]
    %v149 = vld [vmem:[%s113 + $0x118] sm:$0xff]
    %v150 = vld [vmem:[%s113 + $0x120] sm:$0xff]
    %v151 = vld [vmem:[%s113 + $0x128] sm:$0xff]
    %v152 = vld [vmem:[%s113 + $0x130] sm:$0xff]
    %v153 = vld [vmem:[%s113 + $0x138] sm:$0xff]
    %v154 = vld [vmem:[%s113 + $0x140] sm:$0xff]
    %v155 = vld [vmem:[%s113 + $0x148] sm:$0xff]
    %v156 = vld [vmem:[%s113 + $0x150] sm:$0xff]
    %v157 = vld [vmem:[%s113 + $0x158] sm:$0xff]
    %v158 = vld [vmem:[%s113 + $0x160] sm:$0xff]
    %v159 = vld [vmem:[%s113 + $0x168] sm:$0xff]
    %v160 = vld [vmem:[%s113 + $0x170] sm:$0xff]
    %v161 = vld [vmem:[%s113 + $0x178] sm:$0xff]
    %v162 = vld [vmem:[%s0 + $0x40] sm:$0xf0]
    %v163 = vld [vmem:[%s0 + $0x48] sm:$0xf0]
    %v164 = vld [vmem:[%s0 + $0x50] sm:$0xff]
    %v165 = vld [vmem:[%s0 + $0x58] sm:$0xff]
    %v166 = vld [vmem:[%s0 + $0x60] sm:$0xff]
    %v167 = vld [vmem:[%s0 + $0x68] sm:$0xff]
    %v168 = vld [vmem:[%s0 + $0x70] sm:$0xff]
    %v169 = vld [vmem:[%s0 + $0x78] sm:$0xff]
    %v170 = vld [vmem:[%s0 + $0x80] sm:$0x3]
    %v171 = vld [vmem:[%s0 + $0x88] sm:$0x3]
    %vm182 = vcmask 1043456
    %v183 = vrot.slane %v162, 4
    %v184 = vrot.slane %v164, 4
    %v185 = vsel %vm182, %v183, %v184
    %v186 = vrot.slane %v163, 4
    %v187 = vrot.slane %v165, 4
    %v188 = vsel %vm182, %v186, %v187
    %v189 = vrot.slane %v166, 4
    %v190 = vsel %vm182, %v184, %v189
    %v191 = vrot.slane %v167, 4
    %v192 = vsel %vm182, %v187, %v191
    %v193 = vrot.slane %v168, 4
    %v194 = vsel %vm182, %v189, %v193
    %v195 = vrot.slane %v169, 4
    %v196 = vsel %vm182, %v191, %v195
    %v197 = vrot.slane %v170, 4
    %v198 = vsel %vm182, %v193, %v197
    %v199 = vrot.slane %v171, 4
    %v200 = vsel %vm182, %v195, %v199
    %vm205 = vcmask 523264
    %v206 = vsel %vm205, %v188, 0
    %v208 = vsel %vm205, %v192, 0
    %v210 = vsel %vm205, %v196, 0
    %v212 = vsel %vm205, %v200, 0
    %214 = vmatprep.subr.mxu0 %v115
    %215 = vmatpush1.msra.mxu0 %v114
    %216 = vmatprep.subr.mxu0 %v117
    %217 = vmatpush1.msra.mxu0 %v116
    %218 = vmatprep.subr.mxu0 %v119
    %219 = vmatpush1.msra.mxu0 %v118
    %220 = vmatprep.subr.mxu0 %v121
    %221 = vmatpush1.msra.mxu0 %v120
    %222 = vmatprep.subr.mxu0 %v123
    %223 = vmatpush1.msra.mxu0 %v122
    %224 = vmatprep.subr.mxu0 %v125
    %225 = vmatpush1.msra.mxu0 %v124
    %226 = vmatprep.subr.mxu0 %v127
    %227 = vmatpush1.msra.mxu0 %v126
    %228 = vmatprep.subr.mxu0 %v129
    %229 = vmatpush1.msra.mxu0 %v128
    %230 = vmatprep.subr.mxu0 %v131
    %231 = vmatpush1.msra.mxu0 %v130
    %232 = vmatprep.subr.mxu0 %v133
    %233 = vmatpush1.msra.mxu0 %v132
    %234 = vmatprep.subr.mxu0 %v135
    %235 = vmatpush1.msra.mxu0 %v134
    %236 = vmatprep.subr.mxu0 %v137
    %237 = vmatpush1.msra.mxu0 %v136
    %238 = vmatprep.subr.mxu0 %v139
    %239 = vmatpush1.msra.mxu0 %v138
    %240 = vmatprep.subr.mxu0 %v141
    %241 = vmatpush1.msra.mxu0 %v140
    %242 = vmatprep.subr.mxu0 %v143
    %243 = vmatpush1.msra.mxu0 %v142
    %244 = vmatprep.subr.mxu0 %v145
    %245 = vmatpush1.msra.mxu0 %v144
    %246 = vmatprep.subr.mxu0 %v147
    %247 = vmatpush1.msra.mxu0 %v146
    %248 = vmatprep.subr.mxu0 %v149
    %249 = vmatpush1.msra.mxu0 %v148
    %250 = vmatprep.subr.mxu0 %v151
    %251 = vmatpush1.msra.mxu0 %v150
    %252 = vmatprep.subr.mxu0 %v153
    %253 = vmatpush1.msra.mxu0 %v152
    %254 = vmatprep.subr.mxu0 %v155
    %255 = vmatpush1.msra.mxu0 %v154
    %256 = vmatprep.subr.mxu0 %v157
    %257 = vmatpush1.msra.mxu0 %v156
    %258 = vmatprep.subr.mxu0 %v159
    %259 = vmatpush1.msra.mxu0 %v158
    %260 = vmatprep.subr.mxu0 %v161
    %261 = vmatpush1.msra.mxu0 %v160
    %262 = vmatprep.subr.mxu0 0.0
    %263 = vmatpush1.msra.mxu0 0.0
    %264 = vmatprep.subr.mxu0 0.0
    %265 = vmatpush1.msra.mxu0 0.0
    %266 = vmatprep.subr.mxu0 0.0
    %267 = vmatpush1.msra.mxu0 0.0
    %268 = vmatprep.subr.mxu0 0.0
    %269 = vmatpush1.msra.mxu0 0.0
    %270 = vmatprep.subr.mxu0 0.0
    %271 = vmatpush1.msra.mxu0 0.0
    %272 = vmatprep.subr.mxu0 0.0
    %273 = vmatpush1.msra.mxu0 0.0
    %274 = vmatprep.subr.mxu0 0.0
    %275 = vmatpush1.msra.mxu0 0.0
    %276 = vmatprep.subr.mxu0 0.0
    %277 = vmatpush1.msra.mxu0 0.0
    %278 = vmatprep.mubr.f32.mxu0 %v206
    %279 = vmatmul.mubr.f32.gmra.mrb[0].mxu0 %v185
    %v280 = vpop.f32.mrb[0].mxu0
    %v281 = vadd.f32 0.0, %v280
    %v282 = vpop.f32.mrb[0].mxu0
    %v283 = vadd.f32 0.0, %v282
    %284 = vmatprep.mubr.f32.mxu0 %v208
    %285 = vmatmul.mubr.f32.gmra.mrb[0].mxu0 %v190
    %v286 = vpop.f32.mrb[0].mxu0
    %v287 = vadd.f32 0.0, %v286
    %v288 = vpop.f32.mrb[0].mxu0
    %v289 = vadd.f32 0.0, %v288
    %290 = vmatprep.mubr.f32.mxu0 %v210
    %291 = vmatmul.mubr.f32.gmra.mrb[0].mxu0 %v194
    %v292 = vpop.f32.mrb[0].mxu0
    %v293 = vadd.f32 0.0, %v292
    %v294 = vpop.f32.mrb[0].mxu0
    %v295 = vadd.f32 0.0, %v294
    %296 = vmatprep.mubr.f32.mxu0 %v212
    %297 = vmatmul.mubr.f32.gmra.mrb[0].mxu0 %v198
    %v298 = vpop.f32.mrb[0].mxu0
    %v299 = vadd.f32 0.0, %v298
    %v300 = vpop.f32.mrb[0].mxu0
    %v301 = vadd.f32 0.0, %v300
    %302 = vdwg.mxu0
    %v304 = vsel %vm205, %v106, 0
    %v307 = vsel %vm205, %v108, 0
    %v310 = vsel %vm205, %v110, 0
    %v313 = vsel %vm205, %v112, 0
    %315 = vmatprep.subr.mxu0 %v58
    %316 = vmatpush1.msra.mxu0 %v57
    %317 = vmatprep.subr.mxu0 %v60
    %318 = vmatpush1.msra.mxu0 %v59
    %319 = vmatprep.subr.mxu0 %v62
    %320 = vmatpush1.msra.mxu0 %v61
    %321 = vmatprep.subr.mxu0 %v64
    %322 = vmatpush1.msra.mxu0 %v63
    %323 = vmatprep.subr.mxu0 %v66
    %324 = vmatpush1.msra.mxu0 %v65
    %325 = vmatprep.subr.mxu0 %v68
    %326 = vmatpush1.msra.mxu0 %v67
    %327 = vmatprep.subr.mxu0 %v70
    %328 = vmatpush1.msra.mxu0 %v69
    %329 = vmatprep.subr.mxu0 %v72
    %330 = vmatpush1.msra.mxu0 %v71
    %331 = vmatprep.subr.mxu0 %v74
    %332 = vmatpush1.msra.mxu0 %v73
    %333 = vmatprep.subr.mxu0 %v76
    %334 = vmatpush1.msra.mxu0 %v75
    %335 = vmatprep.subr.mxu0 %v78
    %336 = vmatpush1.msra.mxu0 %v77
    %337 = vmatprep.subr.mxu0 %v80
    %338 = vmatpush1.msra.mxu0 %v79
    %339 = vmatprep.subr.mxu0 %v82
    %340 = vmatpush1.msra.mxu0 %v81
    %341 = vmatprep.subr.mxu0 %v84
    %342 = vmatpush1.msra.mxu0 %v83
    %343 = vmatprep.subr.mxu0 %v86
    %344 = vmatpush1.msra.mxu0 %v85
    %345 = vmatprep.subr.mxu0 %v88
    %346 = vmatpush1.msra.mxu0 %v87
    %347 = vmatprep.subr.mxu0 %v90
    %348 = vmatpush1.msra.mxu0 %v89
    %349 = vmatprep.subr.mxu0 %v92
    %350 = vmatpush1.msra.mxu0 %v91
    %351 = vmatprep.subr.mxu0 %v94
    %352 = vmatpush1.msra.mxu0 %v93
    %353 = vmatprep.subr.mxu0 %v96
    %354 = vmatpush1.msra.mxu0 %v95
    %355 = vmatprep.subr.mxu0 %v98
    %356 = vmatpush1.msra.mxu0 %v97
    %357 = vmatprep.subr.mxu0 %v100
    %358 = vmatpush1.msra.mxu0 %v99
    %359 = vmatprep.subr.mxu0 %v102
    %360 = vmatpush1.msra.mxu0 %v101
    %361 = vmatprep.subr.mxu0 %v104
    %362 = vmatpush1.msra.mxu0 %v103
    %363 = vmatprep.subr.mxu0 0.0
    %364 = vmatpush1.msra.mxu0 0.0
    %365 = vmatprep.subr.mxu0 0.0
    %366 = vmatpush1.msra.mxu0 0.0
    %367 = vmatprep.subr.mxu0 0.0
    %368 = vmatpush1.msra.mxu0 0.0
    %369 = vmatprep.subr.mxu0 0.0
    %370 = vmatpush1.msra.mxu0 0.0
    %371 = vmatprep.subr.mxu0 0.0
    %372 = vmatpush1.msra.mxu0 0.0
    %373 = vmatprep.subr.mxu0 0.0
    %374 = vmatpush1.msra.mxu0 0.0
    %375 = vmatprep.subr.mxu0 0.0
    %376 = vmatpush1.msra.mxu0 0.0
    %377 = vmatprep.subr.mxu0 0.0
    %378 = vmatpush1.msra.mxu0 0.0
    %379 = vmatprep.mubr.f32.mxu0 %v304
    %380 = vmatmul.mubr.f32.gmra.mrb[0].mxu0 %v105
    %v381 = vpop.f32.mrb[0].mxu0
    %v382 = vadd.f32 %v281, %v381
    %v383 = vpop.f32.mrb[0].mxu0
    %v384 = vadd.f32 %v283, %v383
    %385 = vmatprep.mubr.f32.mxu0 %v307
    %386 = vmatmul.mubr.f32.gmra.mrb[0].mxu0 %v107
    %v387 = vpop.f32.mrb[0].mxu0
    %v388 = vadd.f32 %v287, %v387
    %v389 = vpop.f32.mrb[0].mxu0
    %v390 = vadd.f32 %v289, %v389
    %391 = vmatprep.mubr.f32.mxu0 %v310
    %392 = vmatmul.mubr.f32.gmra.mrb[0].mxu0 %v109
    %v393 = vpop.f32.mrb[0].mxu0
    %v394 = vadd.f32 %v293, %v393
    %v395 = vpop.f32.mrb[0].mxu0
    %v396 = vadd.f32 %v295, %v395
    %397 = vmatprep.mubr.f32.mxu0 %v313
    %398 = vmatmul.mubr.f32.gmra.mrb[0].mxu0 %v111
    %v399 = vpop.f32.mrb[0].mxu0
    %v400 = vadd.f32 %v299, %v399
    %v401 = vpop.f32.mrb[0].mxu0
    %v402 = vadd.f32 %v301, %v401
    %403 = vdwg.mxu0
    %s404 = scalar_lea.vmem [#allocation2], 768
    %v405 = vld [vmem:[%s404] sm:$0xff]
    %v406 = vld [vmem:[%s404 + $0x8] sm:$0xff]
    %v407 = vld [vmem:[%s404 + $0x10] sm:$0xff]
    %v408 = vld [vmem:[%s404 + $0x18] sm:$0xff]
    %v409 = vld [vmem:[%s404 + $0x20] sm:$0xff]
    %v410 = vld [vmem:[%s404 + $0x28] sm:$0xff]
    %v411 = vld [vmem:[%s404 + $0x30] sm:$0xff]
    %v412 = vld [vmem:[%s404 + $0x38] sm:$0xff]
    %v413 = vld [vmem:[%s404 + $0x40] sm:$0xff]
    %v414 = vld [vmem:[%s404 + $0x48] sm:$0xff]
    %v415 = vld [vmem:[%s404 + $0x50] sm:$0xff]
    %v416 = vld [vmem:[%s404 + $0x58] sm:$0xff]
    %v417 = vld [vmem:[%s404 + $0x60] sm:$0xff]
    %v418 = vld [vmem:[%s404 + $0x68] sm:$0xff]
    %v419 = vld [vmem:[%s404 + $0x70] sm:$0xff]
    %v420 = vld [vmem:[%s404 + $0x78] sm:$0xff]
    %v421 = vld [vmem:[%s404 + $0x80] sm:$0xff]
    %v422 = vld [vmem:[%s404 + $0x88] sm:$0xff]
    %v423 = vld [vmem:[%s404 + $0x90] sm:$0xff]
    %v424 = vld [vmem:[%s404 + $0x98] sm:$0xff]
    %v425 = vld [vmem:[%s404 + $0xa0] sm:$0xff]
    %v426 = vld [vmem:[%s404 + $0xa8] sm:$0xff]
    %v427 = vld [vmem:[%s404 + $0xb0] sm:$0xff]
    %v428 = vld [vmem:[%s404 + $0xb8] sm:$0xff]
    %v429 = vld [vmem:[%s404 + $0xc0] sm:$0xff]
    %v430 = vld [vmem:[%s404 + $0xc8] sm:$0xff]
    %v431 = vld [vmem:[%s404 + $0xd0] sm:$0xff]
    %v432 = vld [vmem:[%s404 + $0xd8] sm:$0xff]
    %v433 = vld [vmem:[%s404 + $0xe0] sm:$0xff]
    %v434 = vld [vmem:[%s404 + $0xe8] sm:$0xff]
    %v435 = vld [vmem:[%s404 + $0xf0] sm:$0xff]
    %v436 = vld [vmem:[%s404 + $0xf8] sm:$0xff]
    %v437 = vld [vmem:[%s404 + $0x100] sm:$0xff]
    %v438 = vld [vmem:[%s404 + $0x108] sm:$0xff]
    %v439 = vld [vmem:[%s404 + $0x110] sm:$0xff]
    %v440 = vld [vmem:[%s404 + $0x118] sm:$0xff]
    %v441 = vld [vmem:[%s404 + $0x120] sm:$0xff]
    %v442 = vld [vmem:[%s404 + $0x128] sm:$0xff]
    %v443 = vld [vmem:[%s404 + $0x130] sm:$0xff]
    %v444 = vld [vmem:[%s404 + $0x138] sm:$0xff]
    %v445 = vld [vmem:[%s404 + $0x140] sm:$0xff]
    %v446 = vld [vmem:[%s404 + $0x148] sm:$0xff]
    %v447 = vld [vmem:[%s404 + $0x150] sm:$0xff]
    %v448 = vld [vmem:[%s404 + $0x158] sm:$0xff]
    %v449 = vld [vmem:[%s404 + $0x160] sm:$0xff]
    %v450 = vld [vmem:[%s404 + $0x168] sm:$0xff]
    %v451 = vld [vmem:[%s404 + $0x170] sm:$0xff]
    %v452 = vld [vmem:[%s404 + $0x178] sm:$0xff]
    %v453 = vld [vmem:[%s0] sm:$0xfe]
    %v454 = vld [vmem:[%s0 + $0x8] sm:$0xfe]
    %v455 = vld [vmem:[%s0 + $0x30] sm:$0x7f]
    %v456 = vld [vmem:[%s0 + $0x38] sm:$0x7f]
    %vm463 = vcmask 1046528
    %v464 = vrot.slane %v453, 1
    %v465 = vrot.slane %v107, 1
    %v466 = vsel %vm463, %v464, %v465
    %v467 = vrot.slane %v454, 1
    %v468 = vrot.slane %v108, 1
    %v469 = vsel %vm463, %v467, %v468
    %v470 = vrot.slane %v109, 1
    %v471 = vsel %vm463, %v465, %v470
    %v472 = vrot.slane %v110, 1
    %v473 = vsel %vm463, %v468, %v472
    %v474 = vrot.slane %v455, 1
    %v475 = vsel %vm463, %v470, %v474
    %v476 = vrot.slane %v456, 1
    %v477 = vsel %vm463, %v472, %v476
    %v482 = vsel %vm205, %v469, 0
    %v484 = vsel %vm205, %v473, 0
    %v486 = vsel %vm205, %v477, 0
    %v488 = vsel %vm205, %v476, 0
    %490 = vmatprep.subr.mxu0 %v406
    %491 = vmatpush1.msra.mxu0 %v405
    %492 = vmatprep.subr.mxu0 %v408
    %493 = vmatpush1.msra.mxu0 %v407
    %494 = vmatprep.subr.mxu0 %v410
    %495 = vmatpush1.msra.mxu0 %v409
    %496 = vmatprep.subr.mxu0 %v412
    %497 = vmatpush1.msra.mxu0 %v411
    %498 = vmatprep.subr.mxu0 %v414
    %499 = vmatpush1.msra.mxu0 %v413
    %500 = vmatprep.subr.mxu0 %v416
    %501 = vmatpush1.msra.mxu0 %v415
    %502 = vmatprep.subr.mxu0 %v418
    %503 = vmatpush1.msra.mxu0 %v417
    %504 = vmatprep.subr.mxu0 %v420
    %505 = vmatpush1.msra.mxu0 %v419
    %506 = vmatprep.subr.mxu0 %v422
    %507 = vmatpush1.msra.mxu0 %v421
    %508 = vmatprep.subr.mxu0 %v424
    %509 = vmatpush1.msra.mxu0 %v423
    %510 = vmatprep.subr.mxu0 %v426
    %511 = vmatpush1.msra.mxu0 %v425
    %512 = vmatprep.subr.mxu0 %v428
    %513 = vmatpush1.msra.mxu0 %v427
    %514 = vmatprep.subr.mxu0 %v430
    %515 = vmatpush1.msra.mxu0 %v429
    %516 = vmatprep.subr.mxu0 %v432
    %517 = vmatpush1.msra.mxu0 %v431
    %518 = vmatprep.subr.mxu0 %v434
    %519 = vmatpush1.msra.mxu0 %v433
    %520 = vmatprep.subr.mxu0 %v436
    %521 = vmatpush1.msra.mxu0 %v435
    %522 = vmatprep.subr.mxu0 %v438
    %523 = vmatpush1.msra.mxu0 %v437
    %524 = vmatprep.subr.mxu0 %v440
    %525 = vmatpush1.msra.mxu0 %v439
    %526 = vmatprep.subr.mxu0 %v442
    %527 = vmatpush1.msra.mxu0 %v441
    %528 = vmatprep.subr.mxu0 %v444
    %529 = vmatpush1.msra.mxu0 %v443
    %530 = vmatprep.subr.mxu0 %v446
    %531 = vmatpush1.msra.mxu0 %v445
    %532 = vmatprep.subr.mxu0 %v448
    %533 = vmatpush1.msra.mxu0 %v447
    %534 = vmatprep.subr.mxu0 %v450
    %535 = vmatpush1.msra.mxu0 %v449
    %536 = vmatprep.subr.mxu0 %v452
    %537 = vmatpush1.msra.mxu0 %v451
    %538 = vmatprep.subr.mxu0 0.0
    %539 = vmatpush1.msra.mxu0 0.0
    %540 = vmatprep.subr.mxu0 0.0
    %541 = vmatpush1.msra.mxu0 0.0
    %542 = vmatprep.subr.mxu0 0.0
    %543 = vmatpush1.msra.mxu0 0.0
    %544 = vmatprep.subr.mxu0 0.0
    %545 = vmatpush1.msra.mxu0 0.0
    %546 = vmatprep.subr.mxu0 0.0
    %547 = vmatpush1.msra.mxu0 0.0
    %548 = vmatprep.subr.mxu0 0.0
    %549 = vmatpush1.msra.mxu0 0.0
    %550 = vmatprep.subr.mxu0 0.0
    %551 = vmatpush1.msra.mxu0 0.0
    %552 = vmatprep.subr.mxu0 0.0
    %553 = vmatpush1.msra.mxu0 0.0
    %554 = vmatprep.mubr.f32.mxu0 %v482
    %555 = vmatmul.mubr.f32.gmra.mrb[0].mxu0 %v466
    %v556 = vpop.f32.mrb[0].mxu0
    %v557 = vadd.f32 0.0, %v556
    %v558 = vpop.f32.mrb[0].mxu0
    %v559 = vadd.f32 0.0, %v558
    %560 = vmatprep.mubr.f32.mxu0 %v484
    %561 = vmatmul.mubr.f32.gmra.mrb[0].mxu0 %v471
    %v562 = vpop.f32.mrb[0].mxu0
    %v563 = vadd.f32 0.0, %v562
    %v564 = vpop.f32.mrb[0].mxu0
    %v565 = vadd.f32 0.0, %v564
    %566 = vmatprep.mubr.f32.mxu0 %v486
    %567 = vmatmul.mubr.f32.gmra.mrb[0].mxu0 %v475
    %v568 = vpop.f32.mrb[0].mxu0
    %v569 = vadd.f32 0.0, %v568
    %v570 = vpop.f32.mrb[0].mxu0
    %v571 = vadd.f32 0.0, %v570
    %572 = vmatprep.mubr.f32.mxu0 %v488
    %573 = vmatmul.mubr.f32.gmra.mrb[0].mxu0 %v474
    %v574 = vpop.f32.mrb[0].mxu0
    %v575 = vadd.f32 0.0, %v574
    %v576 = vpop.f32.mrb[0].mxu0
    %v577 = vadd.f32 0.0, %v576
    %578 = vdwg.mxu0
    %v579 = vadd.f32 %v382, %v557
    %v580 = vadd.f32 %v384, %v559
    %v581 = vadd.f32 %v388, %v563
    %v582 = vadd.f32 %v390, %v565
    %v583 = vadd.f32 %v394, %v569
    %v584 = vadd.f32 %v396, %v571
    %v585 = vadd.f32 %v400, %v575
    %v586 = vadd.f32 %v402, %v577
    %s587 = scalar_lea.vmem [#allocation2], 1152
    %v588 = vld [vmem:[%s587] sm:$0xff]
    %v589 = vld [vmem:[%s587 + $0x8] sm:$0xff]
    %v590 = vld [vmem:[%s587 + $0x10] sm:$0xff]
    %v591 = vld [vmem:[%s587 + $0x18] sm:$0xff]
    %v592 = vld [vmem:[%s587 + $0x20] sm:$0xff]
    %v593 = vld [vmem:[%s587 + $0x28] sm:$0xff]
    %v594 = vld [vmem:[%s587 + $0x30] sm:$0xff]
    %v595 = vld [vmem:[%s587 + $0x38] sm:$0xff]
    %v596 = vld [vmem:[%s587 + $0x40] sm:$0xff]
    %v597 = vld [vmem:[%s587 + $0x48] sm:$0xff]
    %v598 = vld [vmem:[%s587 + $0x50] sm:$0xff]
    %v599 = vld [vmem:[%s587 + $0x58] sm:$0xff]
    %v600 = vld [vmem:[%s587 + $0x60] sm:$0xff]
    %v601 = vld [vmem:[%s587 + $0x68] sm:$0xff]
    %v602 = vld [vmem:[%s587 + $0x70] sm:$0xff]
    %v603 = vld [vmem:[%s587 + $0x78] sm:$0xff]
    %v604 = vld [vmem:[%s587 + $0x80] sm:$0xff]
    %v605 = vld [vmem:[%s587 + $0x88] sm:$0xff]
    %v606 = vld [vmem:[%s587 + $0x90] sm:$0xff]
    %v607 = vld [vmem:[%s587 + $0x98] sm:$0xff]
    %v608 = vld [vmem:[%s587 + $0xa0] sm:$0xff]
    %v609 = vld [vmem:[%s587 + $0xa8] sm:$0xff]
    %v610 = vld [vmem:[%s587 + $0xb0] sm:$0xff]
    %v611 = vld [vmem:[%s587 + $0xb8] sm:$0xff]
    %v612 = vld [vmem:[%s587 + $0xc0] sm:$0xff]
    %v613 = vld [vmem:[%s587 + $0xc8] sm:$0xff]
    %v614 = vld [vmem:[%s587 + $0xd0] sm:$0xff]
    %v615 = vld [vmem:[%s587 + $0xd8] sm:$0xff]
    %v616 = vld [vmem:[%s587 + $0xe0] sm:$0xff]
    %v617 = vld [vmem:[%s587 + $0xe8] sm:$0xff]
    %v618 = vld [vmem:[%s587 + $0xf0] sm:$0xff]
    %v619 = vld [vmem:[%s587 + $0xf8] sm:$0xff]
    %v620 = vld [vmem:[%s587 + $0x100] sm:$0xff]
    %v621 = vld [vmem:[%s587 + $0x108] sm:$0xff]
    %v622 = vld [vmem:[%s587 + $0x110] sm:$0xff]
    %v623 = vld [vmem:[%s587 + $0x118] sm:$0xff]
    %v624 = vld [vmem:[%s587 + $0x120] sm:$0xff]
    %v625 = vld [vmem:[%s587 + $0x128] sm:$0xff]
    %v626 = vld [vmem:[%s587 + $0x130] sm:$0xff]
    %v627 = vld [vmem:[%s587 + $0x138] sm:$0xff]
    %v628 = vld [vmem:[%s587 + $0x140] sm:$0xff]
    %v629 = vld [vmem:[%s587 + $0x148] sm:$0xff]
    %v630 = vld [vmem:[%s587 + $0x150] sm:$0xff]
    %v631 = vld [vmem:[%s587 + $0x158] sm:$0xff]
    %v632 = vld [vmem:[%s587 + $0x160] sm:$0xff]
    %v633 = vld [vmem:[%s587 + $0x168] sm:$0xff]
    %v634 = vld [vmem:[%s587 + $0x170] sm:$0xff]
    %v635 = vld [vmem:[%s587 + $0x178] sm:$0xff]
    %v636 = vld [vmem:[%s0 + $0x90] sm:$0xff]
    %v637 = vld [vmem:[%s0 + $0x98] sm:$0xff]
    %v638 = vld [vmem:[%s0 + $0xa0] sm:$0xff]
    %v639 = vld [vmem:[%s0 + $0xa8] sm:$0xff]
    %v640 = vld [vmem:[%s0 + $0xb0] sm:$0xff]
    %v641 = vld [vmem:[%s0 + $0xb8] sm:$0xff]
    %v642 = vld [vmem:[%s0 + $0xc0] sm:$0x3f]
    %v643 = vld [vmem:[%s0 + $0xc8] sm:$0x3f]
    %v645 = vsel %vm205, %v637, 0
    %v648 = vsel %vm205, %v639, 0
    %v651 = vsel %vm205, %v641, 0
    %v654 = vsel %vm205, %v643, 0
    %656 = vmatprep.subr.mxu0 %v589
    %657 = vmatpush1.msra.mxu0 %v588
    %658 = vmatprep.subr.mxu0 %v591
    %659 = vmatpush1.msra.mxu0 %v590
    %660 = vmatprep.subr.mxu0 %v593
    %661 = vmatpush1.msra.mxu0 %v592
    %662 = vmatprep.subr.mxu0 %v595
    %663 = vmatpush1.msra.mxu0 %v594
    %664 = vmatprep.subr.mxu0 %v597
    %665 = vmatpush1.msra.mxu0 %v596
    %666 = vmatprep.subr.mxu0 %v599
    %667 = vmatpush1.msra.mxu0 %v598
    %668 = vmatprep.subr.mxu0 %v601
    %669 = vmatpush1.msra.mxu0 %v600
    %670 = vmatprep.subr.mxu0 %v603
    %671 = vmatpush1.msra.mxu0 %v602
    %672 = vmatprep.subr.mxu0 %v605
    %673 = vmatpush1.msra.mxu0 %v604
    %674 = vmatprep.subr.mxu0 %v607
    %675 = vmatpush1.msra.mxu0 %v606
    %676 = vmatprep.subr.mxu0 %v609
    %677 = vmatpush1.msra.mxu0 %v608
    %678 = vmatprep.subr.mxu0 %v611
    %679 = vmatpush1.msra.mxu0 %v610
    %680 = vmatprep.subr.mxu0 %v613
    %681 = vmatpush1.msra.mxu0 %v612
    %682 = vmatprep.subr.mxu0 %v615
    %683 = vmatpush1.msra.mxu0 %v614
    %684 = vmatprep.subr.mxu0 %v617
    %685 = vmatpush1.msra.mxu0 %v616
    %686 = vmatprep.subr.mxu0 %v619
    %687 = vmatpush1.msra.mxu0 %v618
    %688 = vmatprep.subr.mxu0 %v621
    %689 = vmatpush1.msra.mxu0 %v620
    %690 = vmatprep.subr.mxu0 %v623
    %691 = vmatpush1.msra.mxu0 %v622
    %692 = vmatprep.subr.mxu0 %v625
    %693 = vmatpush1.msra.mxu0 %v624
    %694 = vmatprep.subr.mxu0 %v627
    %695 = vmatpush1.msra.mxu0 %v626
    %696 = vmatprep.subr.mxu0 %v629
    %697 = vmatpush1.msra.mxu0 %v628
    %698 = vmatprep.subr.mxu0 %v631
    %699 = vmatpush1.msra.mxu0 %v630
    %700 = vmatprep.subr.mxu0 %v633
    %701 = vmatpush1.msra.mxu0 %v632
    %702 = vmatprep.subr.mxu0 %v635
    %703 = vmatpush1.msra.mxu0 %v634
    %704 = vmatprep.subr.mxu0 0.0
    %705 = vmatpush1.msra.mxu0 0.0
    %706 = vmatprep.subr.mxu0 0.0
    %707 = vmatpush1.msra.mxu0 0.0
    %708 = vmatprep.subr.mxu0 0.0
    %709 = vmatpush1.msra.mxu0 0.0
    %710 = vmatprep.subr.mxu0 0.0
    %711 = vmatpush1.msra.mxu0 0.0
    %712 = vmatprep.subr.mxu0 0.0
    %713 = vmatpush1.msra.mxu0 0.0
    %714 = vmatprep.subr.mxu0 0.0
    %715 = vmatpush1.msra.mxu0 0.0
    %716 = vmatprep.subr.mxu0 0.0
    %717 = vmatpush1.msra.mxu0 0.0
    %718 = vmatprep.subr.mxu0 0.0
    %719 = vmatpush1.msra.mxu0 0.0
    %720 = vmatprep.mubr.f32.mxu0 %v645
    %721 = vmatmul.mubr.f32.gmra.mrb[0].mxu0 %v636
    %v722 = vpop.f32.mrb[0].mxu0
    %v723 = vadd.f32 0.0, %v722
    %v724 = vpop.f32.mrb[0].mxu0
    %v725 = vadd.f32 0.0, %v724
    %726 = vmatprep.mubr.f32.mxu0 %v648
    %727 = vmatmul.mubr.f32.gmra.mrb[0].mxu0 %v638
    %v728 = vpop.f32.mrb[0].mxu0
    %v729 = vadd.f32 0.0, %v728
    %v730 = vpop.f32.mrb[0].mxu0
    %v731 = vadd.f32 0.0, %v730
    %732 = vmatprep.mubr.f32.mxu0 %v651
    %733 = vmatmul.mubr.f32.gmra.mrb[0].mxu0 %v640
    %v734 = vpop.f32.mrb[0].mxu0
    %v735 = vadd.f32 0.0, %v734
    %v736 = vpop.f32.mrb[0].mxu0
    %v737 = vadd.f32 0.0, %v736
    %738 = vmatprep.mubr.f32.mxu0 %v654
    %739 = vmatmul.mubr.f32.gmra.mrb[0].mxu0 %v642
    %v740 = vpop.f32.mrb[0].mxu0
    %v741 = vadd.f32 0.0, %v740
    %v742 = vpop.f32.mrb[0].mxu0
    %v743 = vadd.f32 0.0, %v742
    %744 = vdwg.mxu0
    %v745 = vadd.f32 %v579, %v723
    %v746 = vadd.f32 %v580, %v725
    %v747 = vadd.f32 %v581, %v729
    %v748 = vadd.f32 %v582, %v731
    %v749 = vadd.f32 %v583, %v735
    %v750 = vadd.f32 %v584, %v737
    %v751 = vadd.f32 %v585, %v741
    %v752 = vadd.f32 %v586, %v743
    %s753 = scalar_lea.vmem [#allocation2], 1536
    %v754 = vld [vmem:[%s753] sm:$0xff]
    %v755 = vld [vmem:[%s753 + $0x8] sm:$0xff]
    %v756 = vld [vmem:[%s753 + $0x10] sm:$0xff]
    %v757 = vld [vmem:[%s753 + $0x18] sm:$0xff]
    %v758 = vld [vmem:[%s753 + $0x20] sm:$0xff]
    %v759 = vld [vmem:[%s753 + $0x28] sm:$0xff]
    %v760 = vld [vmem:[%s753 + $0x30] sm:$0xff]
    %v761 = vld [vmem:[%s753 + $0x38] sm:$0xff]
    %v762 = vld [vmem:[%s753 + $0x40] sm:$0xff]
    %v763 = vld [vmem:[%s753 + $0x48] sm:$0xff]
    %v764 = vld [vmem:[%s753 + $0x50] sm:$0xff]
    %v765 = vld [vmem:[%s753 + $0x58] sm:$0xff]
    %v766 = vld [vmem:[%s753 + $0x60] sm:$0xff]
    %v767 = vld [vmem:[%s753 + $0x68] sm:$0xff]
    %v768 = vld [vmem:[%s753 + $0x70] sm:$0xff]
    %v769 = vld [vmem:[%s753 + $0x78] sm:$0xff]
    %v770 = vld [vmem:[%s753 + $0x80] sm:$0xff]
    %v771 = vld [vmem:[%s753 + $0x88] sm:$0xff]
    %v772 = vld [vmem:[%s753 + $0x90] sm:$0xff]
    %v773 = vld [vmem:[%s753 + $0x98] sm:$0xff]
    %v774 = vld [vmem:[%s753 + $0xa0] sm:$0xff]
    %v775 = vld [vmem:[%s753 + $0xa8] sm:$0xff]
    %v776 = vld [vmem:[%s753 + $0xb0] sm:$0xff]
    %v777 = vld [vmem:[%s753 + $0xb8] sm:$0xff]
    %v778 = vld [vmem:[%s753 + $0xc0] sm:$0xff]
    %v779 = vld [vmem:[%s753 + $0xc8] sm:$0xff]
    %v780 = vld [vmem:[%s753 + $0xd0] sm:$0xff]
    %v781 = vld [vmem:[%s753 + $0xd8] sm:$0xff]
    %v782 = vld [vmem:[%s753 + $0xe0] sm:$0xff]
    %v783 = vld [vmem:[%s753 + $0xe8] sm:$0xff]
    %v784 = vld [vmem:[%s753 + $0xf0] sm:$0xff]
    %v785 = vld [vmem:[%s753 + $0xf8] sm:$0xff]
    %v786 = vld [vmem:[%s753 + $0x100] sm:$0xff]
    %v787 = vld [vmem:[%s753 + $0x108] sm:$0xff]
    %v788 = vld [vmem:[%s753 + $0x110] sm:$0xff]
    %v789 = vld [vmem:[%s753 + $0x118] sm:$0xff]
    %v790 = vld [vmem:[%s753 + $0x120] sm:$0xff]
    %v791 = vld [vmem:[%s753 + $0x128] sm:$0xff]
    %v792 = vld [vmem:[%s753 + $0x130] sm:$0xff]
    %v793 = vld [vmem:[%s753 + $0x138] sm:$0xff]
    %v794 = vld [vmem:[%s753 + $0x140] sm:$0xff]
    %v795 = vld [vmem:[%s753 + $0x148] sm:$0xff]
    %v796 = vld [vmem:[%s753 + $0x150] sm:$0xff]
    %v797 = vld [vmem:[%s753 + $0x158] sm:$0xff]
    %v798 = vld [vmem:[%s753 + $0x160] sm:$0xff]
    %v799 = vld [vmem:[%s753 + $0x168] sm:$0xff]
    %v800 = vld [vmem:[%s753 + $0x170] sm:$0xff]
    %v801 = vld [vmem:[%s753 + $0x178] sm:$0xff]
    %v802 = vld [vmem:[%s0 + $0xd0] sm:$0xf0]
    %v803 = vld [vmem:[%s0 + $0xd8] sm:$0xf0]
    %v804 = vld [vmem:[%s0 + $0xe0] sm:$0xff]
    %v805 = vld [vmem:[%s0 + $0xe8] sm:$0xff]
    %v806 = vld [vmem:[%s0 + $0xf0] sm:$0xff]
    %v807 = vld [vmem:[%s0 + $0xf8] sm:$0xff]
    %v808 = vld [vmem:[%s0 + $0x100] sm:$0xff]
    %v809 = vld [vmem:[%s0 + $0x108] sm:$0xff]
    %v810 = vld [vmem:[%s0 + $0x110] sm:$0x3]
    %v811 = vld [vmem:[%s0 + $0x118] sm:$0x3]
    %v822 = vrot.slane %v802, 4
    %v823 = vrot.slane %v804, 4
    %v824 = vsel %vm182, %v822, %v823
    %v825 = vrot.slane %v803, 4
    %v826 = vrot.slane %v805, 4
    %v827 = vsel %vm182, %v825, %v826
    %v828 = vrot.slane %v806, 4
    %v829 = vsel %vm182, %v823, %v828
    %v830 = vrot.slane %v807, 4
    %v831 = vsel %vm182, %v826, %v830
    %v832 = vrot.slane %v808, 4
    %v833 = vsel %vm182, %v828, %v832
    %v834 = vrot.slane %v809, 4
    %v835 = vsel %vm182, %v830, %v834
    %v836 = vrot.slane %v810, 4
    %v837 = vsel %vm182, %v832, %v836
    %v838 = vrot.slane %v811, 4
    %v839 = vsel %vm182, %v834, %v838
    %v844 = vsel %vm205, %v827, 0
    %v846 = vsel %vm205, %v831, 0
    %v848 = vsel %vm205, %v835, 0
    %v850 = vsel %vm205, %v839, 0
    %852 = vmatprep.subr.mxu0 %v755
    %853 = vmatpush1.msra.mxu0 %v754
    %854 = vmatprep.subr.mxu0 %v757
    %855 = vmatpush1.msra.mxu0 %v756
    %856 = vmatprep.subr.mxu0 %v759
    %857 = vmatpush1.msra.mxu0 %v758
    %858 = vmatprep.subr.mxu0 %v761
    %859 = vmatpush1.msra.mxu0 %v760
    %860 = vmatprep.subr.mxu0 %v763
    %861 = vmatpush1.msra.mxu0 %v762
    %862 = vmatprep.subr.mxu0 %v765
    %863 = vmatpush1.msra.mxu0 %v764
    %864 = vmatprep.subr.mxu0 %v767
    %865 = vmatpush1.msra.mxu0 %v766
    %866 = vmatprep.subr.mxu0 %v769
    %867 = vmatpush1.msra.mxu0 %v768
    %868 = vmatprep.subr.mxu0 %v771
    %869 = vmatpush1.msra.mxu0 %v770
    %870 = vmatprep.subr.mxu0 %v773
    %871 = vmatpush1.msra.mxu0 %v772
    %872 = vmatprep.subr.mxu0 %v775
    %873 = vmatpush1.msra.mxu0 %v774
    %874 = vmatprep.subr.mxu0 %v777
    %875 = vmatpush1.msra.mxu0 %v776
    %876 = vmatprep.subr.mxu0 %v779
    %877 = vmatpush1.msra.mxu0 %v778
    %878 = vmatprep.subr.mxu0 %v781
    %879 = vmatpush1.msra.mxu0 %v780
    %880 = vmatprep.subr.mxu0 %v783
    %881 = vmatpush1.msra.mxu0 %v782
    %882 = vmatprep.subr.mxu0 %v785
    %883 = vmatpush1.msra.mxu0 %v784
    %884 = vmatprep.subr.mxu0 %v787
    %885 = vmatpush1.msra.mxu0 %v786
    %886 = vmatprep.subr.mxu0 %v789
    %887 = vmatpush1.msra.mxu0 %v788
    %888 = vmatprep.subr.mxu0 %v791
    %889 = vmatpush1.msra.mxu0 %v790
    %890 = vmatprep.subr.mxu0 %v793
    %891 = vmatpush1.msra.mxu0 %v792
    %892 = vmatprep.subr.mxu0 %v795
    %893 = vmatpush1.msra.mxu0 %v794
    %894 = vmatprep.subr.mxu0 %v797
    %895 = vmatpush1.msra.mxu0 %v796
    %896 = vmatprep.subr.mxu0 %v799
    %897 = vmatpush1.msra.mxu0 %v798
    %898 = vmatprep.subr.mxu0 %v801
    %899 = vmatpush1.msra.mxu0 %v800
    %900 = vmatprep.subr.mxu0 0.0
    %901 = vmatpush1.msra.mxu0 0.0
    %902 = vmatprep.subr.mxu0 0.0
    %903 = vmatpush1.msra.mxu0 0.0
    %904 = vmatprep.subr.mxu0 0.0
    %905 = vmatpush1.msra.mxu0 0.0
    %906 = vmatprep.subr.mxu0 0.0
    %907 = vmatpush1.msra.mxu0 0.0
    %908 = vmatprep.subr.mxu0 0.0
    %909 = vmatpush1.msra.mxu0 0.0
    %910 = vmatprep.subr.mxu0 0.0
    %911 = vmatpush1.msra.mxu0 0.0
    %912 = vmatprep.subr.mxu0 0.0
    %913 = vmatpush1.msra.mxu0 0.0
    %914 = vmatprep.subr.mxu0 0.0
    %915 = vmatpush1.msra.mxu0 0.0
    %916 = vmatprep.mubr.f32.mxu0 %v844
    %917 = vmatmul.mubr.f32.gmra.mrb[0].mxu0 %v824
    %v918 = vpop.f32.mrb[0].mxu0
    %v919 = vadd.f32 0.0, %v918
    %v920 = vpop.f32.mrb[0].mxu0
    %v921 = vadd.f32 0.0, %v920
    %922 = vmatprep.mubr.f32.mxu0 %v846
    %923 = vmatmul.mubr.f32.gmra.mrb[0].mxu0 %v829
    %v924 = vpop.f32.mrb[0].mxu0
    %v925 = vadd.f32 0.0, %v924
    %v926 = vpop.f32.mrb[0].mxu0
    %v927 = vadd.f32 0.0, %v926
    %928 = vmatprep.mubr.f32.mxu0 %v848
    %929 = vmatmul.mubr.f32.gmra.mrb[0].mxu0 %v833
    %v930 = vpop.f32.mrb[0].mxu0
    %v931 = vadd.f32 0.0, %v930
    %v932 = vpop.f32.mrb[0].mxu0
    %v933 = vadd.f32 0.0, %v932
    %934 = vmatprep.mubr.f32.mxu0 %v850
    %935 = vmatmul.mubr.f32.gmra.mrb[0].mxu0 %v837
    %v936 = vpop.f32.mrb[0].mxu0
    %v937 = vadd.f32 0.0, %v936
    %v938 = vpop.f32.mrb[0].mxu0
    %v939 = vadd.f32 0.0, %v938
    %940 = vdwg.mxu0
    %v941 = vadd.f32 %v745, %v919
    %v942 = vadd.f32 %v746, %v921
    %v943 = vadd.f32 %v747, %v925
    %v944 = vadd.f32 %v748, %v927
    %v945 = vadd.f32 %v749, %v931
    %v946 = vadd.f32 %v750, %v933
    %v947 = vadd.f32 %v751, %v937
    %v948 = vadd.f32 %v752, %v939
    %s949 = scalar_lea.vmem [#allocation2], 1920
    %v950 = vld [vmem:[%s949] sm:$0xff]
    %v951 = vld [vmem:[%s949 + $0x8] sm:$0xff]
    %v952 = vld [vmem:[%s949 + $0x10] sm:$0xff]
    %v953 = vld [vmem:[%s949 + $0x18] sm:$0xff]
    %v954 = vld [vmem:[%s949 + $0x20] sm:$0xff]
    %v955 = vld [vmem:[%s949 + $0x28] sm:$0xff]
    %v956 = vld [vmem:[%s949 + $0x30] sm:$0xff]
    %v957 = vld [vmem:[%s949 + $0x38] sm:$0xff]
    %v958 = vld [vmem:[%s949 + $0x40] sm:$0xff]
    %v959 = vld [vmem:[%s949 + $0x48] sm:$0xff]
    %v960 = vld [vmem:[%s949 + $0x50] sm:$0xff]
    %v961 = vld [vmem:[%s949 + $0x58] sm:$0xff]
    %v962 = vld [vmem:[%s949 + $0x60] sm:$0xff]
    %v963 = vld [vmem:[%s949 + $0x68] sm:$0xff]
    %v964 = vld [vmem:[%s949 + $0x70] sm:$0xff]
    %v965 = vld [vmem:[%s949 + $0x78] sm:$0xff]
    %v966 = vld [vmem:[%s949 + $0x80] sm:$0xff]
    %v967 = vld [vmem:[%s949 + $0x88] sm:$0xff]
    %v968 = vld [vmem:[%s949 + $0x90] sm:$0xff]
    %v969 = vld [vmem:[%s949 + $0x98] sm:$0xff]
    %v970 = vld [vmem:[%s949 + $0xa0] sm:$0xff]
    %v971 = vld [vmem:[%s949 + $0xa8] sm:$0xff]
    %v972 = vld [vmem:[%s949 + $0xb0] sm:$0xff]
    %v973 = vld [vmem:[%s949 + $0xb8] sm:$0xff]
    %v974 = vld [vmem:[%s949 + $0xc0] sm:$0xff]
    %v975 = vld [vmem:[%s949 + $0xc8] sm:$0xff]
    %v976 = vld [vmem:[%s949 + $0xd0] sm:$0xff]
    %v977 = vld [vmem:[%s949 + $0xd8] sm:$0xff]
    %v978 = vld [vmem:[%s949 + $0xe0] sm:$0xff]
    %v979 = vld [vmem:[%s949 + $0xe8] sm:$0xff]
    %v980 = vld [vmem:[%s949 + $0xf0] sm:$0xff]
    %v981 = vld [vmem:[%s949 + $0xf8] sm:$0xff]
    %v982 = vld [vmem:[%s949 + $0x100] sm:$0xff]
    %v983 = vld [vmem:[%s949 + $0x108] sm:$0xff]
    %v984 = vld [vmem:[%s949 + $0x110] sm:$0xff]
    %v985 = vld [vmem:[%s949 + $0x118] sm:$0xff]
    %v986 = vld [vmem:[%s949 + $0x120] sm:$0xff]
    %v987 = vld [vmem:[%s949 + $0x128] sm:$0xff]
    %v988 = vld [vmem:[%s949 + $0x130] sm:$0xff]
    %v989 = vld [vmem:[%s949 + $0x138] sm:$0xff]
    %v990 = vld [vmem:[%s949 + $0x140] sm:$0xff]
    %v991 = vld [vmem:[%s949 + $0x148] sm:$0xff]
    %v992 = vld [vmem:[%s949 + $0x150] sm:$0xff]
    %v993 = vld [vmem:[%s949 + $0x158] sm:$0xff]
    %v994 = vld [vmem:[%s949 + $0x160] sm:$0xff]
    %v995 = vld [vmem:[%s949 + $0x168] sm:$0xff]
    %v996 = vld [vmem:[%s949 + $0x170] sm:$0xff]
    %v997 = vld [vmem:[%s949 + $0x178] sm:$0xff]
    %v998 = vld [vmem:[%s0 + $0x90] sm:$0xfe]
    %v999 = vld [vmem:[%s0 + $0x98] sm:$0xfe]
    %v1000 = vld [vmem:[%s0 + $0xc0] sm:$0x7f]
    %v1001 = vld [vmem:[%s0 + $0xc8] sm:$0x7f]
    %v1008 = vrot.slane %v998, 1
    %v1009 = vrot.slane %v638, 1
    %v1010 = vsel %vm463, %v1008, %v1009
    %v1011 = vrot.slane %v999, 1
    %v1012 = vrot.slane %v639, 1
    %v1013 = vsel %vm463, %v1011, %v1012
    %v1014 = vrot.slane %v640, 1
    %v1015 = vsel %vm463, %v1009, %v1014
    %v1016 = vrot.slane %v641, 1
    %v1017 = vsel %vm463, %v1012, %v1016
    %v1018 = vrot.slane %v1000, 1
    %v1019 = vsel %vm463, %v1014, %v1018
    %v1020 = vrot.slane %v1001, 1
    %v1021 = vsel %vm463, %v1016, %v1020
    %v1026 = vsel %vm205, %v1013, 0
    %v1028 = vsel %vm205, %v1017, 0
    %v1030 = vsel %vm205, %v1021, 0
    %v1032 = vsel %vm205, %v1020, 0
    %1034 = vmatprep.subr.mxu0 %v951
    %1035 = vmatpush1.msra.mxu0 %v950
    %1036 = vmatprep.subr.mxu0 %v953
    %1037 = vmatpush1.msra.mxu0 %v952
    %1038 = vmatprep.subr.mxu0 %v955
    %1039 = vmatpush1.msra.mxu0 %v954
    %1040 = vmatprep.subr.mxu0 %v957
    %1041 = vmatpush1.msra.mxu0 %v956
    %1042 = vmatprep.subr.mxu0 %v959
    %1043 = vmatpush1.msra.mxu0 %v958
    %1044 = vmatprep.subr.mxu0 %v961
    %1045 = vmatpush1.msra.mxu0 %v960
    %1046 = vmatprep.subr.mxu0 %v963
    %1047 = vmatpush1.msra.mxu0 %v962
    %1048 = vmatprep.subr.mxu0 %v965
    %1049 = vmatpush1.msra.mxu0 %v964
    %1050 = vmatprep.subr.mxu0 %v967
    %1051 = vmatpush1.msra.mxu0 %v966
    %1052 = vmatprep.subr.mxu0 %v969
    %1053 = vmatpush1.msra.mxu0 %v968
    %1054 = vmatprep.subr.mxu0 %v971
    %1055 = vmatpush1.msra.mxu0 %v970
    %1056 = vmatprep.subr.mxu0 %v973
    %1057 = vmatpush1.msra.mxu0 %v972
    %1058 = vmatprep.subr.mxu0 %v975
    %1059 = vmatpush1.msra.mxu0 %v974
    %1060 = vmatprep.subr.mxu0 %v977
    %1061 = vmatpush1.msra.mxu0 %v976
    %1062 = vmatprep.subr.mxu0 %v979
    %1063 = vmatpush1.msra.mxu0 %v978
    %1064 = vmatprep.subr.mxu0 %v981
    %1065 = vmatpush1.msra.mxu0 %v980
    %1066 = vmatprep.subr.mxu0 %v983
    %1067 = vmatpush1.msra.mxu0 %v982
    %1068 = vmatprep.subr.mxu0 %v985
    %1069 = vmatpush1.msra.mxu0 %v984
    %1070 = vmatprep.subr.mxu0 %v987
    %1071 = vmatpush1.msra.mxu0 %v986
    %1072 = vmatprep.subr.mxu0 %v989
    %1073 = vmatpush1.msra.mxu0 %v988
    %1074 = vmatprep.subr.mxu0 %v991
    %1075 = vmatpush1.msra.mxu0 %v990
    %1076 = vmatprep.subr.mxu0 %v993
    %1077 = vmatpush1.msra.mxu0 %v992
    %1078 = vmatprep.subr.mxu0 %v995
    %1079 = vmatpush1.msra.mxu0 %v994
    %1080 = vmatprep.subr.mxu0 %v997
    %1081 = vmatpush1.msra.mxu0 %v996
    %1082 = vmatprep.subr.mxu0 0.0
    %1083 = vmatpush1.msra.mxu0 0.0
    %1084 = vmatprep.subr.mxu0 0.0
    %1085 = vmatpush1.msra.mxu0 0.0
    %1086 = vmatprep.subr.mxu0 0.0
    %1087 = vmatpush1.msra.mxu0 0.0
    %1088 = vmatprep.subr.mxu0 0.0
    %1089 = vmatpush1.msra.mxu0 0.0
    %1090 = vmatprep.subr.mxu0 0.0
    %1091 = vmatpush1.msra.mxu0 0.0
    %1092 = vmatprep.subr.mxu0 0.0
    %1093 = vmatpush1.msra.mxu0 0.0
    %1094 = vmatprep.subr.mxu0 0.0
    %1095 = vmatpush1.msra.mxu0 0.0
    %1096 = vmatprep.subr.mxu0 0.0
    %1097 = vmatpush1.msra.mxu0 0.0
    %1098 = vmatprep.mubr.f32.mxu0 %v1026
    %1099 = vmatmul.mubr.f32.gmra.mrb[0].mxu0 %v1010
    %v1100 = vpop.f32.mrb[0].mxu0
    %v1101 = vadd.f32 0.0, %v1100
    %v1102 = vpop.f32.mrb[0].mxu0
    %v1103 = vadd.f32 0.0, %v1102
    %1104 = vmatprep.mubr.f32.mxu0 %v1028
    %1105 = vmatmul.mubr.f32.gmra.mrb[0].mxu0 %v1015
    %v1106 = vpop.f32.mrb[0].mxu0
    %v1107 = vadd.f32 0.0, %v1106
    %v1108 = vpop.f32.mrb[0].mxu0
    %v1109 = vadd.f32 0.0, %v1108
    %1110 = vmatprep.mubr.f32.mxu0 %v1030
    %1111 = vmatmul.mubr.f32.gmra.mrb[0].mxu0 %v1019
    %v1112 = vpop.f32.mrb[0].mxu0
    %v1113 = vadd.f32 0.0, %v1112
    %v1114 = vpop.f32.mrb[0].mxu0
    %v1115 = vadd.f32 0.0, %v1114
    %1116 = vmatprep.mubr.f32.mxu0 %v1032
    %1117 = vmatmul.mubr.f32.gmra.mrb[0].mxu0 %v1018
    %v1118 = vpop.f32.mrb[0].mxu0
    %v1119 = vadd.f32 0.0, %v1118
    %v1120 = vpop.f32.mrb[0].mxu0
    %v1121 = vadd.f32 0.0, %v1120
    %1122 = vdwg.mxu0
    %v1123 = vadd.f32 %v941, %v1101
    %v1124 = vadd.f32 %v942, %v1103
    %v1125 = vadd.f32 %v943, %v1107
    %v1126 = vadd.f32 %v944, %v1109
    %v1127 = vadd.f32 %v945, %v1113
    %v1128 = vadd.f32 %v946, %v1115
    %v1129 = vadd.f32 %v947, %v1119
    %v1130 = vadd.f32 %v948, %v1121
    %s1131 = scalar_lea.vmem [#allocation2], 2304
    %v1132 = vld [vmem:[%s1131] sm:$0xff]
    %v1133 = vld [vmem:[%s1131 + $0x8] sm:$0xff]
    %v1134 = vld [vmem:[%s1131 + $0x10] sm:$0xff]
    %v1135 = vld [vmem:[%s1131 + $0x18] sm:$0xff]
    %v1136 = vld [vmem:[%s1131 + $0x20] sm:$0xff]
    %v1137 = vld [vmem:[%s1131 + $0x28] sm:$0xff]
    %v1138 = vld [vmem:[%s1131 + $0x30] sm:$0xff]
    %v1139 = vld [vmem:[%s1131 + $0x38] sm:$0xff]
    %v1140 = vld [vmem:[%s1131 + $0x40] sm:$0xff]
    %v1141 = vld [vmem:[%s1131 + $0x48] sm:$0xff]
    %v1142 = vld [vmem:[%s1131 + $0x50] sm:$0xff]
    %v1143 = vld [vmem:[%s1131 + $0x58] sm:$0xff]
    %v1144 = vld [vmem:[%s1131 + $0x60] sm:$0xff]
    %v1145 = vld [vmem:[%s1131 + $0x68] sm:$0xff]
    %v1146 = vld [vmem:[%s1131 + $0x70] sm:$0xff]
    %v1147 = vld [vmem:[%s1131 + $0x78] sm:$0xff]
    %v1148 = vld [vmem:[%s1131 + $0x80] sm:$0xff]
    %v1149 = vld [vmem:[%s1131 + $0x88] sm:$0xff]
    %v1150 = vld [vmem:[%s1131 + $0x90] sm:$0xff]
    %v1151 = vld [vmem:[%s1131 + $0x98] sm:$0xff]
    %v1152 = vld [vmem:[%s1131 + $0xa0] sm:$0xff]
    %v1153 = vld [vmem:[%s1131 + $0xa8] sm:$0xff]
    %v1154 = vld [vmem:[%s1131 + $0xb0] sm:$0xff]
    %v1155 = vld [vmem:[%s1131 + $0xb8] sm:$0xff]
    %v1156 = vld [vmem:[%s1131 + $0xc0] sm:$0xff]
    %v1157 = vld [vmem:[%s1131 + $0xc8] sm:$0xff]
    %v1158 = vld [vmem:[%s1131 + $0xd0] sm:$0xff]
    %v1159 = vld [vmem:[%s1131 + $0xd8] sm:$0xff]
    %v1160 = vld [vmem:[%s1131 + $0xe0] sm:$0xff]
    %v1161 = vld [vmem:[%s1131 + $0xe8] sm:$0xff]
    %v1162 = vld [vmem:[%s1131 + $0xf0] sm:$0xff]
    %v1163 = vld [vmem:[%s1131 + $0xf8] sm:$0xff]
    %v1164 = vld [vmem:[%s1131 + $0x100] sm:$0xff]
    %v1165 = vld [vmem:[%s1131 + $0x108] sm:$0xff]
    %v1166 = vld [vmem:[%s1131 + $0x110] sm:$0xff]
    %v1167 = vld [vmem:[%s1131 + $0x118] sm:$0xff]
    %v1168 = vld [vmem:[%s1131 + $0x120] sm:$0xff]
    %v1169 = vld [vmem:[%s1131 + $0x128] sm:$0xff]
    %v1170 = vld [vmem:[%s1131 + $0x130] sm:$0xff]
    %v1171 = vld [vmem:[%s1131 + $0x138] sm:$0xff]
    %v1172 = vld [vmem:[%s1131 + $0x140] sm:$0xff]
    %v1173 = vld [vmem:[%s1131 + $0x148] sm:$0xff]
    %v1174 = vld [vmem:[%s1131 + $0x150] sm:$0xff]
    %v1175 = vld [vmem:[%s1131 + $0x158] sm:$0xff]
    %v1176 = vld [vmem:[%s1131 + $0x160] sm:$0xff]
    %v1177 = vld [vmem:[%s1131 + $0x168] sm:$0xff]
    %v1178 = vld [vmem:[%s1131 + $0x170] sm:$0xff]
    %v1179 = vld [vmem:[%s1131 + $0x178] sm:$0xff]
    %v1180 = vld [vmem:[%s0] sm:$0xc0]
    %v1181 = vld [vmem:[%s0 + $0x8] sm:$0xc0]
    %v1182 = vld [vmem:[%s0 + $0x10] sm:$0xff]
    %v1183 = vld [vmem:[%s0 + $0x18] sm:$0xff]
    %v1184 = vld [vmem:[%s0 + $0x20] sm:$0xff]
    %v1185 = vld [vmem:[%s0 + $0x28] sm:$0xff]
    %v1186 = vld [vmem:[%s0 + $0x30] sm:$0xff]
    %v1187 = vld [vmem:[%s0 + $0x38] sm:$0xff]
    %v1188 = vld [vmem:[%s0 + $0x40] sm:$0xf]
    %v1189 = vld [vmem:[%s0 + $0x48] sm:$0xf]
    %vm1200 = vcmask 1041408
    %v1201 = vrot.slane %v1180, 6
    %v1202 = vrot.slane %v1182, 6
    %v1203 = vsel %vm1200, %v1201, %v1202
    %v1204 = vrot.slane %v1181, 6
    %v1205 = vrot.slane %v1183, 6
    %v1206 = vsel %vm1200, %v1204, %v1205
    %v1207 = vrot.slane %v1184, 6
    %v1208 = vsel %vm1200, %v1202, %v1207
    %v1209 = vrot.slane %v1185, 6
    %v1210 = vsel %vm1200, %v1205, %v1209
    %v1211 = vrot.slane %v1186, 6
    %v1212 = vsel %vm1200, %v1207, %v1211
    %v1213 = vrot.slane %v1187, 6
    %v1214 = vsel %vm1200, %v1209, %v1213
    %v1215 = vrot.slane %v1188, 6
    %v1216 = vsel %vm1200, %v1211, %v1215
    %v1217 = vrot.slane %v1189, 6
    %v1218 = vsel %vm1200, %v1213, %v1217
    %v1223 = vsel %vm205, %v1206, 0
    %v1225 = vsel %vm205, %v1210, 0
    %v1227 = vsel %vm205, %v1214, 0
    %v1229 = vsel %vm205, %v1218, 0
    %1231 = vmatprep.subr.mxu0 %v1133
    %1232 = vmatpush1.msra.mxu0 %v1132
    %1233 = vmatprep.subr.mxu0 %v1135
    %1234 = vmatpush1.msra.mxu0 %v1134
    %1235 = vmatprep.subr.mxu0 %v1137
    %1236 = vmatpush1.msra.mxu0 %v1136
    %1237 = vmatprep.subr.mxu0 %v1139
    %1238 = vmatpush1.msra.mxu0 %v1138
    %1239 = vmatprep.subr.mxu0 %v1141
    %1240 = vmatpush1.msra.mxu0 %v1140
    %1241 = vmatprep.subr.mxu0 %v1143
    %1242 = vmatpush1.msra.mxu0 %v1142
    %1243 = vmatprep.subr.mxu0 %v1145
    %1244 = vmatpush1.msra.mxu0 %v1144
    %1245 = vmatprep.subr.mxu0 %v1147
    %1246 = vmatpush1.msra.mxu0 %v1146
    %1247 = vmatprep.subr.mxu0 %v1149
    %1248 = vmatpush1.msra.mxu0 %v1148
    %1249 = vmatprep.subr.mxu0 %v1151
    %1250 = vmatpush1.msra.mxu0 %v1150
    %1251 = vmatprep.subr.mxu0 %v1153
    %1252 = vmatpush1.msra.mxu0 %v1152
    %1253 = vmatprep.subr.mxu0 %v1155
    %1254 = vmatpush1.msra.mxu0 %v1154
    %1255 = vmatprep.subr.mxu0 %v1157
    %1256 = vmatpush1.msra.mxu0 %v1156
    %1257 = vmatprep.subr.mxu0 %v1159
    %1258 = vmatpush1.msra.mxu0 %v1158
    %1259 = vmatprep.subr.mxu0 %v1161
    %1260 = vmatpush1.msra.mxu0 %v1160
    %1261 = vmatprep.subr.mxu0 %v1163
    %1262 = vmatpush1.msra.mxu0 %v1162
    %1263 = vmatprep.subr.mxu0 %v1165
    %1264 = vmatpush1.msra.mxu0 %v1164
    %1265 = vmatprep.subr.mxu0 %v1167
    %1266 = vmatpush1.msra.mxu0 %v1166
    %1267 = vmatprep.subr.mxu0 %v1169
    %1268 = vmatpush1.msra.mxu0 %v1168
    %1269 = vmatprep.subr.mxu0 %v1171
    %1270 = vmatpush1.msra.mxu0 %v1170
    %1271 = vmatprep.subr.mxu0 %v1173
    %1272 = vmatpush1.msra.mxu0 %v1172
    %1273 = vmatprep.subr.mxu0 %v1175
    %1274 = vmatpush1.msra.mxu0 %v1174
    %1275 = vmatprep.subr.mxu0 %v1177
    %1276 = vmatpush1.msra.mxu0 %v1176
    %1277 = vmatprep.subr.mxu0 %v1179
    %1278 = vmatpush1.msra.mxu0 %v1178
    %1279 = vmatprep.subr.mxu0 0.0
    %1280 = vmatpush1.msra.mxu0 0.0
    %1281 = vmatprep.subr.mxu0 0.0
    %1282 = vmatpush1.msra.mxu0 0.0
    %1283 = vmatprep.subr.mxu0 0.0
    %1284 = vmatpush1.msra.mxu0 0.0
    %1285 = vmatprep.subr.mxu0 0.0
    %1286 = vmatpush1.msra.mxu0 0.0
    %1287 = vmatprep.subr.mxu0 0.0
    %1288 = vmatpush1.msra.mxu0 0.0
    %1289 = vmatprep.subr.mxu0 0.0
    %1290 = vmatpush1.msra.mxu0 0.0
    %1291 = vmatprep.subr.mxu0 0.0
    %1292 = vmatpush1.msra.mxu0 0.0
    %1293 = vmatprep.subr.mxu0 0.0
    %1294 = vmatpush1.msra.mxu0 0.0
    %1295 = vmatprep.mubr.f32.mxu0 %v1223
    %1296 = vmatmul.mubr.f32.gmra.mrb[0].mxu0 %v1203
    %v1297 = vpop.f32.mrb[0].mxu0
    %v1298 = vadd.f32 0.0, %v1297
    %v1299 = vpop.f32.mrb[0].mxu0
    %v1300 = vadd.f32 0.0, %v1299
    %1301 = vmatprep.mubr.f32.mxu0 %v1225
    %1302 = vmatmul.mubr.f32.gmra.mrb[0].mxu0 %v1208
    %v1303 = vpop.f32.mrb[0].mxu0
    %v1304 = vadd.f32 0.0, %v1303
    %v1305 = vpop.f32.mrb[0].mxu0
    %v1306 = vadd.f32 0.0, %v1305
    %1307 = vmatprep.mubr.f32.mxu0 %v1227
    %1308 = vmatmul.mubr.f32.gmra.mrb[0].mxu0 %v1212
    %v1309 = vpop.f32.mrb[0].mxu0
    %v1310 = vadd.f32 0.0, %v1309
    %v1311 = vpop.f32.mrb[0].mxu0
    %v1312 = vadd.f32 0.0, %v1311
    %1313 = vmatprep.mubr.f32.mxu0 %v1229
    %1314 = vmatmul.mubr.f32.gmra.mrb[0].mxu0 %v1216
    %v1315 = vpop.f32.mrb[0].mxu0
    %v1316 = vadd.f32 0.0, %v1315
    %v1317 = vpop.f32.mrb[0].mxu0
    %v1318 = vadd.f32 0.0, %v1317
    %1319 = vdwg.mxu0
    %v1320 = vadd.f32 %v1123, %v1298
    %v1321 = vadd.f32 %v1124, %v1300
    %v1322 = vadd.f32 %v1125, %v1304
    %v1323 = vadd.f32 %v1126, %v1306
    %v1324 = vadd.f32 %v1127, %v1310
    %v1325 = vadd.f32 %v1128, %v1312
    %v1326 = vadd.f32 %v1129, %v1316
    %v1327 = vadd.f32 %v1130, %v1318
    %s1328 = scalar_lea.vmem [#allocation2], 2688
    %v1329 = vld [vmem:[%s1328] sm:$0xff]
    %v1330 = vld [vmem:[%s1328 + $0x8] sm:$0xff]
    %v1331 = vld [vmem:[%s1328 + $0x10] sm:$0xff]
    %v1332 = vld [vmem:[%s1328 + $0x18] sm:$0xff]
    %v1333 = vld [vmem:[%s1328 + $0x20] sm:$0xff]
    %v1334 = vld [vmem:[%s1328 + $0x28] sm:$0xff]
    %v1335 = vld [vmem:[%s1328 + $0x30] sm:$0xff]
    %v1336 = vld [vmem:[%s1328 + $0x38] sm:$0xff]
    %v1337 = vld [vmem:[%s1328 + $0x40] sm:$0xff]
    %v1338 = vld [vmem:[%s1328 + $0x48] sm:$0xff]
    %v1339 = vld [vmem:[%s1328 + $0x50] sm:$0xff]
    %v1340 = vld [vmem:[%s1328 + $0x58] sm:$0xff]
    %v1341 = vld [vmem:[%s1328 + $0x60] sm:$0xff]
    %v1342 = vld [vmem:[%s1328 + $0x68] sm:$0xff]
    %v1343 = vld [vmem:[%s1328 + $0x70] sm:$0xff]
    %v1344 = vld [vmem:[%s1328 + $0x78] sm:$0xff]
    %v1345 = vld [vmem:[%s1328 + $0x80] sm:$0xff]
    %v1346 = vld [vmem:[%s1328 + $0x88] sm:$0xff]
    %v1347 = vld [vmem:[%s1328 + $0x90] sm:$0xff]
    %v1348 = vld [vmem:[%s1328 + $0x98] sm:$0xff]
    %v1349 = vld [vmem:[%s1328 + $0xa0] sm:$0xff]
    %v1350 = vld [vmem:[%s1328 + $0xa8] sm:$0xff]
    %v1351 = vld [vmem:[%s1328 + $0xb0] sm:$0xff]
    %v1352 = vld [vmem:[%s1328 + $0xb8] sm:$0xff]
    %v1353 = vld [vmem:[%s1328 + $0xc0] sm:$0xff]
    %v1354 = vld [vmem:[%s1328 + $0xc8] sm:$0xff]
    %v1355 = vld [vmem:[%s1328 + $0xd0] sm:$0xff]
    %v1356 = vld [vmem:[%s1328 + $0xd8] sm:$0xff]
    %v1357 = vld [vmem:[%s1328 + $0xe0] sm:$0xff]
    %v1358 = vld [vmem:[%s1328 + $0xe8] sm:$0xff]
    %v1359 = vld [vmem:[%s1328 + $0xf0] sm:$0xff]
    %v1360 = vld [vmem:[%s1328 + $0xf8] sm:$0xff]
    %v1361 = vld [vmem:[%s1328 + $0x100] sm:$0xff]
    %v1362 = vld [vmem:[%s1328 + $0x108] sm:$0xff]
    %v1363 = vld [vmem:[%s1328 + $0x110] sm:$0xff]
    %v1364 = vld [vmem:[%s1328 + $0x118] sm:$0xff]
    %v1365 = vld [vmem:[%s1328 + $0x120] sm:$0xff]
    %v1366 = vld [vmem:[%s1328 + $0x128] sm:$0xff]
    %v1367 = vld [vmem:[%s1328 + $0x130] sm:$0xff]
    %v1368 = vld [vmem:[%s1328 + $0x138] sm:$0xff]
    %v1369 = vld [vmem:[%s1328 + $0x140] sm:$0xff]
    %v1370 = vld [vmem:[%s1328 + $0x148] sm:$0xff]
    %v1371 = vld [vmem:[%s1328 + $0x150] sm:$0xff]
    %v1372 = vld [vmem:[%s1328 + $0x158] sm:$0xff]
    %v1373 = vld [vmem:[%s1328 + $0x160] sm:$0xff]
    %v1374 = vld [vmem:[%s1328 + $0x168] sm:$0xff]
    %v1375 = vld [vmem:[%s1328 + $0x170] sm:$0xff]
    %v1376 = vld [vmem:[%s1328 + $0x178] sm:$0xff]
    %v1377 = vld [vmem:[%s0 + $0x50] sm:$0xfc]
    %v1378 = vld [vmem:[%s0 + $0x58] sm:$0xfc]
    %v1379 = vld [vmem:[%s0 + $0x80] sm:$0xff]
    %v1380 = vld [vmem:[%s0 + $0x88] sm:$0xff]
    %vm1385 = vcmask 1045504
    %v1386 = vrot.slane %v1377, 2
    %v1387 = vrot.slane %v166, 2
    %v1388 = vsel %vm1385, %v1386, %v1387
    %v1389 = vrot.slane %v1378, 2
    %v1390 = vrot.slane %v167, 2
    %v1391 = vsel %vm1385, %v1389, %v1390
    %v1392 = vrot.slane %v168, 2
    %v1393 = vsel %vm1385, %v1387, %v1392
    %v1394 = vrot.slane %v169, 2
    %v1395 = vsel %vm1385, %v1390, %v1394
    %v1396 = vrot.slane %v1379, 2
    %v1397 = vsel %vm1385, %v1392, %v1396
    %v1398 = vrot.slane %v1380, 2
    %v1399 = vsel %vm1385, %v1394, %v1398
    %v1404 = vsel %vm205, %v1391, 0
    %v1406 = vsel %vm205, %v1395, 0
    %v1408 = vsel %vm205, %v1399, 0
    %v1410 = vsel %vm205, %v1398, 0
    %1412 = vmatprep.subr.mxu0 %v1330
    %1413 = vmatpush1.msra.mxu0 %v1329
    %1414 = vmatprep.subr.mxu0 %v1332
    %1415 = vmatpush1.msra.mxu0 %v1331
    %1416 = vmatprep.subr.mxu0 %v1334
    %1417 = vmatpush1.msra.mxu0 %v1333
    %1418 = vmatprep.subr.mxu0 %v1336
    %1419 = vmatpush1.msra.mxu0 %v1335
    %1420 = vmatprep.subr.mxu0 %v1338
    %1421 = vmatpush1.msra.mxu0 %v1337
    %1422 = vmatprep.subr.mxu0 %v1340
    %1423 = vmatpush1.msra.mxu0 %v1339
    %1424 = vmatprep.subr.mxu0 %v1342
    %1425 = vmatpush1.msra.mxu0 %v1341
    %1426 = vmatprep.subr.mxu0 %v1344
    %1427 = vmatpush1.msra.mxu0 %v1343
    %1428 = vmatprep.subr.mxu0 %v1346
    %1429 = vmatpush1.msra.mxu0 %v1345
    %1430 = vmatprep.subr.mxu0 %v1348
    %1431 = vmatpush1.msra.mxu0 %v1347
    %1432 = vmatprep.subr.mxu0 %v1350
    %1433 = vmatpush1.msra.mxu0 %v1349
    %1434 = vmatprep.subr.mxu0 %v1352
    %1435 = vmatpush1.msra.mxu0 %v1351
    %1436 = vmatprep.subr.mxu0 %v1354
    %1437 = vmatpush1.msra.mxu0 %v1353
    %1438 = vmatprep.subr.mxu0 %v1356
    %1439 = vmatpush1.msra.mxu0 %v1355
    %1440 = vmatprep.subr.mxu0 %v1358
    %1441 = vmatpush1.msra.mxu0 %v1357
    %1442 = vmatprep.subr.mxu0 %v1360
    %1443 = vmatpush1.msra.mxu0 %v1359
    %1444 = vmatprep.subr.mxu0 %v1362
    %1445 = vmatpush1.msra.mxu0 %v1361
    %1446 = vmatprep.subr.mxu0 %v1364
    %1447 = vmatpush1.msra.mxu0 %v1363
    %1448 = vmatprep.subr.mxu0 %v1366
    %1449 = vmatpush1.msra.mxu0 %v1365
    %1450 = vmatprep.subr.mxu0 %v1368
    %1451 = vmatpush1.msra.mxu0 %v1367
    %1452 = vmatprep.subr.mxu0 %v1370
    %1453 = vmatpush1.msra.mxu0 %v1369
    %1454 = vmatprep.subr.mxu0 %v1372
    %1455 = vmatpush1.msra.mxu0 %v1371
    %1456 = vmatprep.subr.mxu0 %v1374
    %1457 = vmatpush1.msra.mxu0 %v1373
    %1458 = vmatprep.subr.mxu0 %v1376
    %1459 = vmatpush1.msra.mxu0 %v1375
    %1460 = vmatprep.subr.mxu0 0.0
    %1461 = vmatpush1.msra.mxu0 0.0
    %1462 = vmatprep.subr.mxu0 0.0
    %1463 = vmatpush1.msra.mxu0 0.0
    %1464 = vmatprep.subr.mxu0 0.0
    %1465 = vmatpush1.msra.mxu0 0.0
    %1466 = vmatprep.subr.mxu0 0.0
    %1467 = vmatpush1.msra.mxu0 0.0
    %1468 = vmatprep.subr.mxu0 0.0
    %1469 = vmatpush1.msra.mxu0 0.0
    %1470 = vmatprep.subr.mxu0 0.0
    %1471 = vmatpush1.msra.mxu0 0.0
    %1472 = vmatprep.subr.mxu0 0.0
    %1473 = vmatpush1.msra.mxu0 0.0
    %1474 = vmatprep.subr.mxu0 0.0
    %1475 = vmatpush1.msra.mxu0 0.0
    %1476 = vmatprep.mubr.f32.mxu0 %v1404
    %1477 = vmatmul.mubr.f32.gmra.mrb[0].mxu0 %v1388
    %v1478 = vpop.f32.mrb[0].mxu0
    %v1479 = vadd.f32 0.0, %v1478
    %v1480 = vpop.f32.mrb[0].mxu0
    %v1481 = vadd.f32 0.0, %v1480
    %1482 = vmatprep.mubr.f32.mxu0 %v1406
    %1483 = vmatmul.mubr.f32.gmra.mrb[0].mxu0 %v1393
    %v1484 = vpop.f32.mrb[0].mxu0
    %v1485 = vadd.f32 0.0, %v1484
    %v1486 = vpop.f32.mrb[0].mxu0
    %v1487 = vadd.f32 0.0, %v1486
    %1488 = vmatprep.mubr.f32.mxu0 %v1408
    %1489 = vmatmul.mubr.f32.gmra.mrb[0].mxu0 %v1397
    %v1490 = vpop.f32.mrb[0].mxu0
    %v1491 = vadd.f32 0.0, %v1490
    %v1492 = vpop.f32.mrb[0].mxu0
    %v1493 = vadd.f32 0.0, %v1492
    %1494 = vmatprep.mubr.f32.mxu0 %v1410
    %1495 = vmatmul.mubr.f32.gmra.mrb[0].mxu0 %v1396
    %v1496 = vpop.f32.mrb[0].mxu0
    %v1497 = vadd.f32 0.0, %v1496
    %v1498 = vpop.f32.mrb[0].mxu0
    %v1499 = vadd.f32 0.0, %v1498
    %1500 = vdwg.mxu0
    %v1501 = vadd.f32 %v1320, %v1479
    %v1502 = vadd.f32 %v1321, %v1481
    %v1503 = vadd.f32 %v1322, %v1485
    %v1504 = vadd.f32 %v1323, %v1487
    %v1505 = vadd.f32 %v1324, %v1491
    %v1506 = vadd.f32 %v1325, %v1493
    %v1507 = vadd.f32 %v1326, %v1497
    %v1508 = vadd.f32 %v1327, %v1499
    %s1509 = scalar_lea.vmem [#allocation2], 3072
    %v1510 = vld [vmem:[%s1509] sm:$0xff]
    %v1511 = vld [vmem:[%s1509 + $0x8] sm:$0xff]
    %v1512 = vld [vmem:[%s1509 + $0x10] sm:$0xff]
    %v1513 = vld [vmem:[%s1509 + $0x18] sm:$0xff]
    %v1514 = vld [vmem:[%s1509 + $0x20] sm:$0xff]
    %v1515 = vld [vmem:[%s1509 + $0x28] sm:$0xff]
    %v1516 = vld [vmem:[%s1509 + $0x30] sm:$0xff]
    %v1517 = vld [vmem:[%s1509 + $0x38] sm:$0xff]
    %v1518 = vld [vmem:[%s1509 + $0x40] sm:$0xff]
    %v1519 = vld [vmem:[%s1509 + $0x48] sm:$0xff]
    %v1520 = vld [vmem:[%s1509 + $0x50] sm:$0xff]
    %v1521 = vld [vmem:[%s1509 + $0x58] sm:$0xff]
    %v1522 = vld [vmem:[%s1509 + $0x60] sm:$0xff]
    %v1523 = vld [vmem:[%s1509 + $0x68] sm:$0xff]
    %v1524 = vld [vmem:[%s1509 + $0x70] sm:$0xff]
    %v1525 = vld [vmem:[%s1509 + $0x78] sm:$0xff]
    %v1526 = vld [vmem:[%s1509 + $0x80] sm:$0xff]
    %v1527 = vld [vmem:[%s1509 + $0x88] sm:$0xff]
    %v1528 = vld [vmem:[%s1509 + $0x90] sm:$0xff]
    %v1529 = vld [vmem:[%s1509 + $0x98] sm:$0xff]
    %v1530 = vld [vmem:[%s1509 + $0xa0] sm:$0xff]
    %v1531 = vld [vmem:[%s1509 + $0xa8] sm:$0xff]
    %v1532 = vld [vmem:[%s1509 + $0xb0] sm:$0xff]
    %v1533 = vld [vmem:[%s1509 + $0xb8] sm:$0xff]
    %v1534 = vld [vmem:[%s1509 + $0xc0] sm:$0xff]
    %v1535 = vld [vmem:[%s1509 + $0xc8] sm:$0xff]
    %v1536 = vld [vmem:[%s1509 + $0xd0] sm:$0xff]
    %v1537 = vld [vmem:[%s1509 + $0xd8] sm:$0xff]
    %v1538 = vld [vmem:[%s1509 + $0xe0] sm:$0xff]
    %v1539 = vld [vmem:[%s1509 + $0xe8] sm:$0xff]
    %v1540 = vld [vmem:[%s1509 + $0xf0] sm:$0xff]
    %v1541 = vld [vmem:[%s1509 + $0xf8] sm:$0xff]
    %v1542 = vld [vmem:[%s1509 + $0x100] sm:$0xff]
    %v1543 = vld [vmem:[%s1509 + $0x108] sm:$0xff]
    %v1544 = vld [vmem:[%s1509 + $0x110] sm:$0xff]
    %v1545 = vld [vmem:[%s1509 + $0x118] sm:$0xff]
    %v1546 = vld [vmem:[%s1509 + $0x120] sm:$0xff]
    %v1547 = vld [vmem:[%s1509 + $0x128] sm:$0xff]
    %v1548 = vld [vmem:[%s1509 + $0x130] sm:$0xff]
    %v1549 = vld [vmem:[%s1509 + $0x138] sm:$0xff]
    %v1550 = vld [vmem:[%s1509 + $0x140] sm:$0xff]
    %v1551 = vld [vmem:[%s1509 + $0x148] sm:$0xff]
    %v1552 = vld [vmem:[%s1509 + $0x150] sm:$0xff]
    %v1553 = vld [vmem:[%s1509 + $0x158] sm:$0xff]
    %v1554 = vld [vmem:[%s1509 + $0x160] sm:$0xff]
    %v1555 = vld [vmem:[%s1509 + $0x168] sm:$0xff]
    %v1556 = vld [vmem:[%s1509 + $0x170] sm:$0xff]
    %v1557 = vld [vmem:[%s1509 + $0x178] sm:$0xff]
    %v1558 = vld [vmem:[%s0] sm:$0x80]
    %v1559 = vld [vmem:[%s0 + $0x8] sm:$0x80]
    %v1560 = vld [vmem:[%s0 + $0x40] sm:$0x1f]
    %v1561 = vld [vmem:[%s0 + $0x48] sm:$0x1f]
    %vm1566 = vcmask 1040384
    %v1567 = vrot.slane %v1558, 7
    %v1568 = vrot.slane %v1182, 7
    %v1569 = vsel %vm1566, %v1567, %v1568
    %v1570 = vrot.slane %v1559, 7
    %v1571 = vrot.slane %v1183, 7
    %v1572 = vsel %vm1566, %v1570, %v1571
    %v1573 = vrot.slane %v1184, 7
    %v1574 = vsel %vm1566, %v1568, %v1573
    %v1575 = vrot.slane %v1185, 7
    %v1576 = vsel %vm1566, %v1571, %v1575
    %v1577 = vrot.slane %v1186, 7
    %v1578 = vsel %vm1566, %v1573, %v1577
    %v1579 = vrot.slane %v1187, 7
    %v1580 = vsel %vm1566, %v1575, %v1579
    %v1581 = vrot.slane %v1560, 7
    %v1582 = vsel %vm1566, %v1577, %v1581
    %v1583 = vrot.slane %v1561, 7
    %v1584 = vsel %vm1566, %v1579, %v1583
    %v1589 = vsel %vm205, %v1572, 0
    %v1591 = vsel %vm205, %v1576, 0
    %v1593 = vsel %vm205, %v1580, 0
    %v1595 = vsel %vm205, %v1584, 0
    %1597 = vmatprep.subr.mxu0 %v1511
    %1598 = vmatpush1.msra.mxu0 %v1510
    %1599 = vmatprep.subr.mxu0 %v1513
    %1600 = vmatpush1.msra.mxu0 %v1512
    %1601 = vmatprep.subr.mxu0 %v1515
    %1602 = vmatpush1.msra.mxu0 %v1514
    %1603 = vmatprep.subr.mxu0 %v1517
    %1604 = vmatpush1.msra.mxu0 %v1516
    %1605 = vmatprep.subr.mxu0 %v1519
    %1606 = vmatpush1.msra.mxu0 %v1518
    %1607 = vmatprep.subr.mxu0 %v1521
    %1608 = vmatpush1.msra.mxu0 %v1520
    %1609 = vmatprep.subr.mxu0 %v1523
    %1610 = vmatpush1.msra.mxu0 %v1522
    %1611 = vmatprep.subr.mxu0 %v1525
    %1612 = vmatpush1.msra.mxu0 %v1524
    %1613 = vmatprep.subr.mxu0 %v1527
    %1614 = vmatpush1.msra.mxu0 %v1526
    %1615 = vmatprep.subr.mxu0 %v1529
    %1616 = vmatpush1.msra.mxu0 %v1528
    %1617 = vmatprep.subr.mxu0 %v1531
    %1618 = vmatpush1.msra.mxu0 %v1530
    %1619 = vmatprep.subr.mxu0 %v1533
    %1620 = vmatpush1.msra.mxu0 %v1532
    %1621 = vmatprep.subr.mxu0 %v1535
    %1622 = vmatpush1.msra.mxu0 %v1534
    %1623 = vmatprep.subr.mxu0 %v1537
    %1624 = vmatpush1.msra.mxu0 %v1536
    %1625 = vmatprep.subr.mxu0 %v1539
    %1626 = vmatpush1.msra.mxu0 %v1538
    %1627 = vmatprep.subr.mxu0 %v1541
    %1628 = vmatpush1.msra.mxu0 %v1540
    %1629 = vmatprep.subr.mxu0 %v1543
    %1630 = vmatpush1.msra.mxu0 %v1542
    %1631 = vmatprep.subr.mxu0 %v1545
    %1632 = vmatpush1.msra.mxu0 %v1544
    %1633 = vmatprep.subr.mxu0 %v1547
    %1634 = vmatpush1.msra.mxu0 %v1546
    %1635 = vmatprep.subr.mxu0 %v1549
    %1636 = vmatpush1.msra.mxu0 %v1548
    %1637 = vmatprep.subr.mxu0 %v1551
    %1638 = vmatpush1.msra.mxu0 %v1550
    %1639 = vmatprep.subr.mxu0 %v1553
    %1640 = vmatpush1.msra.mxu0 %v1552
    %1641 = vmatprep.subr.mxu0 %v1555
    %1642 = vmatpush1.msra.mxu0 %v1554
    %1643 = vmatprep.subr.mxu0 %v1557
    %1644 = vmatpush1.msra.mxu0 %v1556
    %1645 = vmatprep.subr.mxu0 0.0
    %1646 = vmatpush1.msra.mxu0 0.0
    %1647 = vmatprep.subr.mxu0 0.0
    %1648 = vmatpush1.msra.mxu0 0.0
    %1649 = vmatprep.subr.mxu0 0.0
    %1650 = vmatpush1.msra.mxu0 0.0
    %1651 = vmatprep.subr.mxu0 0.0
    %1652 = vmatpush1.msra.mxu0 0.0
    %1653 = vmatprep.subr.mxu0 0.0
    %1654 = vmatpush1.msra.mxu0 0.0
    %1655 = vmatprep.subr.mxu0 0.0
    %1656 = vmatpush1.msra.mxu0 0.0
    %1657 = vmatprep.subr.mxu0 0.0
    %1658 = vmatpush1.msra.mxu0 0.0
    %1659 = vmatprep.subr.mxu0 0.0
    %1660 = vmatpush1.msra.mxu0 0.0
    %1661 = vmatprep.mubr.f32.mxu0 %v1589
    %1662 = vmatmul.mubr.f32.gmra.mrb[0].mxu0 %v1569
    %v1663 = vpop.f32.mrb[0].mxu0
    %v1664 = vadd.f32 0.0, %v1663
    %v1665 = vpop.f32.mrb[0].mxu0
    %v1666 = vadd.f32 0.0, %v1665
    %1667 = vmatprep.mubr.f32.mxu0 %v1591
    %1668 = vmatmul.mubr.f32.gmra.mrb[0].mxu0 %v1574
    %v1669 = vpop.f32.mrb[0].mxu0
    %v1670 = vadd.f32 0.0, %v1669
    %v1671 = vpop.f32.mrb[0].mxu0
    %v1672 = vadd.f32 0.0, %v1671
    %1673 = vmatprep.mubr.f32.mxu0 %v1593
    %1674 = vmatmul.mubr.f32.gmra.mrb[0].mxu0 %v1578
    %v1675 = vpop.f32.mrb[0].mxu0
    %v1676 = vadd.f32 0.0, %v1675
    %v1677 = vpop.f32.mrb[0].mxu0
    %v1678 = vadd.f32 0.0, %v1677
    %1679 = vmatprep.mubr.f32.mxu0 %v1595
    %1680 = vmatmul.mubr.f32.gmra.mrb[0].mxu0 %v1582
    %v1681 = vpop.f32.mrb[0].mxu0
    %v1682 = vadd.f32 0.0, %v1681
    %v1683 = vpop.f32.mrb[0].mxu0
    %v1684 = vadd.f32 0.0, %v1683
    %1685 = vdwg.mxu0
    %v1686 = vadd.f32 %v1501, %v1664
    %v1687 = vadd.f32 %v1502, %v1666
    %v1688 = vadd.f32 %v1503, %v1670
    %v1689 = vadd.f32 %v1504, %v1672
    %v1690 = vadd.f32 %v1505, %v1676
    %v1691 = vadd.f32 %v1506, %v1678
    %v1692 = vadd.f32 %v1507, %v1682
    %v1693 = vadd.f32 %v1508, %v1684
    %v1694 = vld [vmem:[%s4] sm:$0xff]
    %v1695 = vld [vmem:[%s4 + $0x8] sm:$0xff]
    %v1696 = vld [vmem:[%s4 + $0x10] sm:$0xff]
    %v1697 = vld [vmem:[%s4 + $0x18] sm:$0x3f]
    %1699 = vset.pattern.permute.xlu0 0
    %1700 = vperm.xlu0 %1699, %v1694
    %v1701 = vpop.permute.xlu0 %1700
    %1704 = vset.pattern.permute.xlu0 0
    %1705 = vperm.xlu0 %1704, %v1695
    %v1706 = vpop.permute.xlu0 %1705
    %1709 = vset.pattern.permute.xlu0 0
    %1710 = vperm.xlu0 %1709, %v1696
    %v1711 = vpop.permute.xlu0 %1710
    %1714 = vset.pattern.permute.xlu0 0
    %1715 = vperm.xlu0 %1714, %v1697
    %v1716 = vpop.permute.xlu0 %1715
    %v1718 = vmul.f32 %v1686, %v1701
    %v1719 = vmul.f32 %v1687, %v1701
    %v1720 = vmul.f32 %v1688, %v1706
    %v1721 = vmul.f32 %v1689, %v1706
    %v1722 = vmul.f32 %v1690, %v1711
    %v1723 = vmul.f32 %v1691, %v1711
    %v1724 = vmul.f32 %v1692, %v1716
    %v1725 = vmul.f32 %v1693, %v1716
    %v1726 = vadd.f32 %v1718, %v1720
    %v1727 = vadd.f32 %v1726, %v1722
    %v1728 = vsel %vm1385, %v1724, 0.0
    %v1729 = vadd.f32 %v1727, %v1728
    %v1730 = vrot.slane %v1729, 4
    %v1731 = vadd.f32 %v1729, %v1730
    %v1732 = vrot.slane %v1731, 2
    %v1733 = vadd.f32 %v1731, %v1732
    %v1734 = vrot.slane %v1733, 1
    %v1735 = vadd.f32 %v1733, %v1734
    %v1736 = vsel %vm205, %v1719, 0.0
    %v1737 = vsel %vm205, %v1721, 0.0
    %v1738 = vadd.f32 %v1736, %v1737
    %v1739 = vsel %vm205, %v1723, 0.0
    %v1740 = vadd.f32 %v1738, %v1739
    %vm1741 = vcmask 521216
    %v1742 = vsel %vm1741, %v1725, 0.0
    %v1743 = vadd.f32 %v1740, %v1742
    %v1744 = vrot.slane %v1743, 4
    %v1745 = vadd.f32 %v1743, %v1744
    %v1746 = vrot.slane %v1745, 2
    %v1747 = vadd.f32 %v1745, %v1746
    %v1748 = vrot.slane %v1747, 1
    %v1749 = vadd.f32 %v1747, %v1748
    %v1750 = vadd.f32 %v1735, 0.0
    %v1751 = vadd.f32 %v1749, 0.0
    %v1752 = vmul.f32 %v1750, 0.04
    %v1753 = vmul.f32 %v1751, 0.04
    %v1754 = vsub.f32 %v1686, %v1752
    %v1755 = vsub.f32 %v1687, %v1753
    %v1756 = vsub.f32 %v1688, %v1752
    %v1757 = vsub.f32 %v1689, %v1753
    %v1758 = vsub.f32 %v1690, %v1752
    %v1759 = vsub.f32 %v1691, %v1753
    %v1760 = vsub.f32 %v1692, %v1752
    %v1761 = vsub.f32 %v1693, %v1753
    %v1762 = vmul.f32 %v1754, %v1701
    %v1763 = vmul.f32 %v1755, %v1701
    %v1764 = vmul.f32 %v1756, %v1706
    %v1765 = vmul.f32 %v1757, %v1706
    %v1766 = vmul.f32 %v1758, %v1711
    %v1767 = vmul.f32 %v1759, %v1711
    %v1768 = vmul.f32 %v1760, %v1716
    %v1769 = vmul.f32 %v1761, %v1716
    %v1770 = vmul.f32 %v1762, %v1762
    %v1771 = vmul.f32 %v1763, %v1763
    %v1772 = vmul.f32 %v1764, %v1764
    %v1773 = vmul.f32 %v1765, %v1765
    %v1774 = vmul.f32 %v1766, %v1766
    %v1775 = vmul.f32 %v1767, %v1767
    %v1776 = vmul.f32 %v1768, %v1768
    %v1777 = vmul.f32 %v1769, %v1769
    %v1778 = vadd.f32 %v1770, %v1772
    %v1779 = vadd.f32 %v1778, %v1774
    %v1780 = vsel %vm1385, %v1776, 0.0
    %v1781 = vadd.f32 %v1779, %v1780
    %v1782 = vrot.slane %v1781, 4
    %v1783 = vadd.f32 %v1781, %v1782
    %v1784 = vrot.slane %v1783, 2
    %v1785 = vadd.f32 %v1783, %v1784
    %v1786 = vrot.slane %v1785, 1
    %v1787 = vadd.f32 %v1785, %v1786
    %v1788 = vsel %vm205, %v1771, 0.0
    %v1789 = vsel %vm205, %v1773, 0.0
    %v1790 = vadd.f32 %v1788, %v1789
    %v1791 = vsel %vm205, %v1775, 0.0
    %v1792 = vadd.f32 %v1790, %v1791
    %v1793 = vsel %vm1741, %v1777, 0.0
    %v1794 = vadd.f32 %v1792, %v1793
    %v1795 = vrot.slane %v1794, 4
    %v1796 = vadd.f32 %v1794, %v1795
    %v1797 = vrot.slane %v1796, 2
    %v1798 = vadd.f32 %v1796, %v1797
    %v1799 = vrot.slane %v1798, 1
    %v1800 = vadd.f32 %v1798, %v1799
    %v1801 = vadd.f32 %v1787, 0.0
    %v1802 = vadd.f32 %v1800, 0.0
    %v1803 = vmul.f32 %v1801, 0.04
    %v1804 = vmul.f32 %v1802, 0.04
    %v1805 = vadd.f32 %v1803, 0.001
    %v1806 = vadd.f32 %v1804, 0.001
    %v1807 = vrsqrt.pop %v1805
    %v1808 = vrsqrt.pop %v1806
    %v1809 = vld [vmem:[#allocation4] sm:$0x3]
    %v1811 = vlaneseq
    %v1812 = vshrl.u32 %v1811, 7
    %v1813 = vsub.s32 0, %v1812
    %v1814 = vrot.slane %v1809, %v1813
    %v1815 = vlaneseq
    %v1816 = vshrl.u32 %v1815, 7
    %v1817 = vsub.s32 1, %v1816
    %v1818 = vrot.slane %v1809, %v1817
    %v1821 = vmul.f32 %v1807, %v1814
    %v1822 = vmul.f32 %v1808, %v1818
    %v1823 = vld [vmem:[#allocation6] sm:$0x3]
    %v1824 = vlaneseq
    %v1825 = vshrl.u32 %v1824, 7
    %v1826 = vsub.s32 0, %v1825
    %v1827 = vrot.slane %v1821, %v1826
    %v1828 = vlaneseq
    %v1829 = vshrl.u32 %v1828, 7
    %v1830 = vsub.s32 0, %v1829
    %v1831 = vrot.slane %v1822, %v1830
    %v1832 = vmul.f32 %v1754, %v1827
    %v1833 = vmul.f32 %v1755, %v1831
    %v1834 = vmul.f32 %v1756, %v1827
    %v1835 = vmul.f32 %v1757, %v1831
    %v1836 = vmul.f32 %v1758, %v1827
    %v1837 = vmul.f32 %v1759, %v1831
    %v1838 = vmul.f32 %v1760, %v1827
    %v1839 = vmul.f32 %v1761, %v1831
    %v1841 = vlaneseq
    %v1842 = vshrl.u32 %v1841, 7
    %v1843 = vsub.s32 0, %v1842
    %v1844 = vrot.slane %v1823, %v1843
    %v1845 = vlaneseq
    %v1846 = vshrl.u32 %v1845, 7
    %v1847 = vsub.s32 1, %v1846
    %v1848 = vrot.slane %v1823, %v1847
    %v1851 = vadd.f32 %v1832, %v1844
    %v1852 = vadd.f32 %v1833, %v1848
    %v1853 = vadd.f32 %v1834, %v1844
    %v1854 = vadd.f32 %v1835, %v1848
    %v1855 = vadd.f32 %v1836, %v1844
    %v1856 = vadd.f32 %v1837, %v1848
    %v1857 = vadd.f32 %v1838, %v1844
    %v1858 = vadd.f32 %v1839, %v1848
    %v1859 = vmax.f32 %v1851, 0.0
    %v1860 = vmax.f32 %v1852, 0.0
    %v1861 = vmax.f32 %v1853, 0.0
    %v1862 = vmax.f32 %v1854, 0.0
    %v1863 = vmax.f32 %v1855, 0.0
    %v1864 = vmax.f32 %v1856, 0.0
    %v1865 = vmax.f32 %v1857, 0.0
    %v1866 = vmax.f32 %v1858, 0.0
    %1867 = vst [vmem:[%s5] sm:$0xff] %v1859
    %1868 = vst.msk [vmem:[%s5 + $0x8] sm:$0xff] %vm205, %v1860
    %1869 = vst [vmem:[%s5 + $0x10] sm:$0xff] %v1861
    %1870 = vst.msk [vmem:[%s5 + $0x18] sm:$0xff] %vm205, %v1862
    %1871 = vst [vmem:[%s5 + $0x20] sm:$0xff] %v1863
    %1872 = vst.msk [vmem:[%s5 + $0x28] sm:$0xff] %vm205, %v1864
    %1873 = vst [vmem:[%s5 + $0x30] sm:$0x3f] %v1865
    %1874 = vst.msk [vmem:[%s5 + $0x38] sm:$0x3f] %vm1741, %v1866
    // Predicated region
    $region34: #{conv_bn_relu.1} parent=1 // pred_check
      _
    $region35: #{conv_bn_relu.1} parent=1 // pred_check_branch
      %1876 = sbr.rel (0) target = $region37
    $region36: #{conv_bn_relu.1} parent=1 // pred_region
      _
    $region37: #{conv_bn_relu.1} parent=1 // pred_fallthru
      _
    // Predicated region
    $region38: #{conv_bn_relu.1} parent=1 // pred_check
      _
    $region39: #{conv_bn_relu.1} parent=1 // pred_check_branch
      %1878 = sbr.rel (0) target = $region41
    $region40: #{conv_bn_relu.1} parent=1 // pred_region
      _
    $region41: #{conv_bn_relu.1} parent=1 // pred_fallthru
      _
    %1879 = vsyncpa [#allocation3], 1
    %1880 = vsyncpa [#allocation5], 1

</llo_original>
